<compile_context>
chip_gen: v6e
topology: v6e:2x2x1
jax: 0.10.0
libtpu: 0.0.40
codegen_flags: <defaults>
</compile_context>

<pallas_src>
import math
import jax
import jax.numpy as jnp
from jax.experimental import pallas as pl
from jax.experimental.pallas import tpu as pltpu

# problem sizes (small, consistent with the module)
B, S, H, NH = 2, 8, 32, 4
DH = H // NH
EPS = 1e-12


def _rows_per_step():
    """How many batch elements each grid step processes.

    v5e / v6e have one TensorCore, so grid=(B,) is just a serial loop with
    ~0.35 us/step fixed overhead; collapse it and process all batches in one
    step.  On multi-TensorCore parts (v7x, v4/v5p megacore) keep one batch
    element per step so dimension_semantics=("parallel",) can shard across
    cores.
    """
    try:
        kind = jax.devices()[0].device_kind.lower()
    except Exception:
        return 1
    single_tc = any(t in kind for t in ("v5 lite", "v5e", "v6 lite", "v6e"))
    return B if single_tc else 1


def self_attention_kernel(x_ref, mask_ref, wqkv_ref, bqkv_ref, wd_ref,
                          vecs_ref, o_ref):
    bs = x_ref.shape[1]        # BB * S rows in this step (static)
    bb = bs // S               # batch elements flattened into this tile

    x = x_ref[0].astype(jnp.float32)                       # [bs, H]

    # Fused Q/K/V projection: one MXU matmul with N = 3H.
    qkv = jnp.dot(x, wqkv_ref[...],
                  preferred_element_type=jnp.float32) + bqkv_ref[...]  # [bs, 3H]

    # Additive attention bias: per-key mask broadcast over query rows, plus a
    # block-diagonal gate (-1e9 off-block) so flattened batches never attend
    # across batch boundaries.  Hoisted out of the head loop.
    bias = jnp.broadcast_to(mask_ref[0].astype(jnp.float32), (bs, bs))
    if bb > 1:
        q_blk = jax.lax.broadcasted_iota(jnp.int32, (bs, bs), 0) // S
        k_blk = jax.lax.broadcasted_iota(jnp.int32, (bs, bs), 1) // S
        bias = bias + jnp.where(q_blk == k_blk, 0.0, -1e9).astype(jnp.float32)

    scale = 1.0 / math.sqrt(DH)
    dims_nt = (((1,), (1,)), ((), ()))   # contract head dim: q @ k^T, no explicit .T

    acc = jnp.zeros((bs, H), jnp.float32)
    for h in range(NH):                  # static unroll over heads
        qh = qkv[:, h * DH:(h + 1) * DH]                       # [bs, DH]
        kh = qkv[:, H + h * DH: H + (h + 1) * DH]              # [bs, DH]
        vh = qkv[:, 2 * H + h * DH: 2 * H + (h + 1) * DH]      # [bs, DH]

        s = jax.lax.dot_general(qh, kh, dims_nt,
                                preferred_element_type=jnp.float32)   # [bs, bs]
        s = s * scale + bias
        s = s - jnp.max(s, axis=-1, keepdims=True)
        p = jnp.exp(s)
        p = p / jnp.sum(p, axis=-1, keepdims=True)             # softmax
        # attn_dropout: identity (eval mode)

        ctx = jnp.dot(p, vh, preferred_element_type=jnp.float32)      # [bs, DH]
        # Fold the output dense: ctx_h @ W_dense[h*DH:(h+1)*DH, :]
        acc = acc + jnp.dot(ctx, wd_ref[h * DH:(h + 1) * DH, :],
                            preferred_element_type=jnp.float32)       # [bs, H]

    # dense bias + residual + LayerNorm (out_dropout: identity in eval mode)
    hidden = acc + vecs_ref[0:1, :] + x
    u = jnp.mean(hidden, axis=-1, keepdims=True)
    var = jnp.mean((hidden - u) ** 2, axis=-1, keepdims=True)
    normed = (hidden - u) * jax.lax.rsqrt(var + EPS)
    out = vecs_ref[1:2, :] * normed + vecs_ref[2:3, :]
    o_ref[0] = out.astype(o_ref.dtype)


def self_attention(x, attention_mask, params):
    """x: [B, S, H] f32, attention_mask: [B, 1, 1, S] additive mask."""
    bb = _rows_per_step()
    g = B // bb
    bs = bb * S

    # Wrapper-side packing / layout plumbing (cheap XLA ops).
    x_in = x.reshape(g, bs, H)
    mask_in = attention_mask.reshape(B, S).reshape(g, 1, bs).astype(jnp.float32)
    w_qkv = jnp.concatenate([params["wq"], params["wk"], params["wv"]], axis=1)   # [H, 3H]
    b_qkv = jnp.concatenate([params["bq"], params["bk"], params["bv"]]).reshape(1, 3 * H)
    vecs = jnp.stack([params["bd"], params["ln_w"], params["ln_b"]], axis=0)      # [3, H]

    out = pl.pallas_call(
        self_attention_kernel,
        out_shape=jax.ShapeDtypeStruct((g, bs, H), x.dtype),
        grid_spec=pltpu.PrefetchScalarGridSpec(
            num_scalar_prefetch=0,
            grid=(g,),
            in_specs=[
                pl.BlockSpec((1, bs, H), lambda i: (i, 0, 0)),    # x
                pl.BlockSpec((1, 1, bs), lambda i: (i, 0, 0)),    # per-key mask
                pl.BlockSpec((H, 3 * H), lambda i: (0, 0)),       # fused Wqkv
                pl.BlockSpec((1, 3 * H), lambda i: (0, 0)),       # fused bqkv
                pl.BlockSpec((H, H), lambda i: (0, 0)),           # W_dense
                pl.BlockSpec((3, H), lambda i: (0, 0)),           # [bd; gamma; beta]
            ],
            out_specs=pl.BlockSpec((1, bs, H), lambda i: (i, 0, 0)),
        ),
        compiler_params=pltpu.CompilerParams(
            dimension_semantics=("parallel",)),
    )(x_in, mask_in, w_qkv, b_qkv, params["wd"], vecs)

    return out.reshape(B, S, H)


def reference(x, attention_mask, params):
    """Pure-JAX reference mirroring the PyTorch forward (eval mode)."""
    q = x @ params["wq"] + params["bq"]
    k = x @ params["wk"] + params["bk"]
    v = x @ params["wv"] + params["bv"]

    def split(t):  # [B,S,H] -> [B,NH,S,DH]
        return t.reshape(B, S, NH, DH).transpose(0, 2, 1, 3)

    qh, kh, vh = split(q), split(k), split(v)
    scores = jnp.einsum("bnqd,bnkd->bnqk", qh, kh) / math.sqrt(DH)
    scores = scores + attention_mask                       # broadcast [B,1,1,S]
    probs = jax.nn.softmax(scores, axis=-1)
    ctx = jnp.einsum("bnqk,bnkd->bnqd", probs, vh)
    ctx = ctx.transpose(0, 2, 1, 3).reshape(B, S, H)
    hidden = ctx @ params["wd"] + params["bd"] + x
    u = hidden.mean(-1, keepdims=True)
    s2 = ((hidden - u) ** 2).mean(-1, keepdims=True)
    normed = (hidden - u) / jnp.sqrt(s2 + EPS)
    return params["ln_w"] * normed + params["ln_b"]


if __name__ == "__main__":
    key = jax.random.PRNGKey(0)
    ks = jax.random.split(key, 10)

    def lin(kw, kb):
        w = 0.02 * jax.random.normal(kw, (H, H), jnp.float32)
        b = 0.02 * jax.random.normal(kb, (H,), jnp.float32)
        return w, b

    wq, bq = lin(ks[0], ks[1])
    wk, bk = lin(ks[2], ks[3])
    wv, bv = lin(ks[4], ks[5])
    wd, bd = lin(ks[6], ks[7])

    params = dict(
        wq=wq, bq=bq, wk=wk, bk=bk, wv=wv, bv=bv, wd=wd, bd=bd,
        ln_w=jnp.ones((H,), jnp.float32), ln_b=jnp.zeros((H,), jnp.float32),
    )

    x = jax.random.normal(ks[8], (B, S, H), jnp.float32)
    # BERT-style additive mask: 0 for attended positions, -10000 for padding.
    pad = (jax.random.uniform(ks[9], (B, S)) > 0.8).astype(jnp.float32)
    attention_mask = (pad * -10000.0).reshape(B, 1, 1, S)

    out = jax.block_until_ready(self_attention(x, attention_mask, params))
    ref = reference(x, attention_mask, params)

    assert out.shape == (B, S, H)
    max_err = float(jnp.max(jnp.abs(out - ref)))
    assert jnp.allclose(out, ref, atol=1e-4, rtol=1e-4), max_err

    print("KERNEL_OK")
</pallas_src>

<mosaic_0001>
module attributes {stable_mosaic.version = 11 : i64} {
  func.func @self_attention_kernel(%arg0: i32, %arg1: memref<1x8x32xf32, #tpu.memory_space<vmem>>, %arg2: memref<1x1x8xf32, #tpu.memory_space<vmem>>, %arg3: memref<32x96xf32, #tpu.memory_space<vmem>>, %arg4: memref<1x96xf32, #tpu.memory_space<vmem>>, %arg5: memref<32x32xf32, #tpu.memory_space<vmem>>, %arg6: memref<3x32xf32, #tpu.memory_space<vmem>>, %arg7: memref<1x8x32xf32, #tpu.memory_space<vmem>>) attributes {dimension_semantics = [#tpu.dimension_semantics<parallel>], iteration_bounds = array<i64: 2>, scalar_prefetch = 0 : i64, scratch_operands = 0 : i64, tpu.core_type = #tpu.core_type<tc>, window_params = [{transform_indices = @transform_0, window_bounds = array<i64: 1, 8, 32>}, {transform_indices = @transform_1, window_bounds = array<i64: 1, 1, 8>}, {pipeline_mode = #tpu.pipeline_mode<synchronous>, transform_indices = @transform_2, window_bounds = array<i64: 32, 96>}, {pipeline_mode = #tpu.pipeline_mode<synchronous>, transform_indices = @transform_3, window_bounds = array<i64: 1, 96>}, {pipeline_mode = #tpu.pipeline_mode<synchronous>, transform_indices = @transform_4, window_bounds = array<i64: 32, 32>}, {pipeline_mode = #tpu.pipeline_mode<synchronous>, transform_indices = @transform_5, window_bounds = array<i64: 3, 32>}, {transform_indices = @transform_6, window_bounds = array<i64: 1, 8, 32>}]} {
    %c0 = arith.constant 0 : index
    %c0_0 = arith.constant 0 : index
    %c0_1 = arith.constant 0 : index
    %0 = vector.load %arg1[%c0, %c0_0, %c0_1] : memref<1x8x32xf32, #tpu.memory_space<vmem>>, vector<1x8x32xf32>
    %1 = vector.shape_cast %0 : vector<1x8x32xf32> to vector<8x32xf32>
    %c0_2 = arith.constant 0 : index
    %c0_3 = arith.constant 0 : index
    %2 = vector.load %arg3[%c0_2, %c0_3] : memref<32x96xf32, #tpu.memory_space<vmem>>, vector<32x96xf32>
    %cst = arith.constant dense<0.000000e+00> : vector<8x96xf32>
    %3 = tpu.matmul %1, %2, %cst {dimension_numbers = #tpu.dot_dimension_numbers<[1], [0], [0], [1], [0, 0, 1, 1], [], []>} : vector<8x32xf32>, vector<32x96xf32>, vector<8x96xf32> -> vector<8x96xf32>
    %c0_4 = arith.constant 0 : index
    %c0_5 = arith.constant 0 : index
    %4 = vector.load %arg4[%c0_4, %c0_5] : memref<1x96xf32, #tpu.memory_space<vmem>>, vector<1x96xf32>
    %5 = vector.broadcast %4 : vector<1x96xf32> to vector<8x96xf32>
    %6 = arith.addf %3, %5 : vector<8x96xf32>
    %c0_6 = arith.constant 0 : index
    %c0_7 = arith.constant 0 : index
    %c0_8 = arith.constant 0 : index
    %7 = vector.load %arg2[%c0_6, %c0_7, %c0_8] : memref<1x1x8xf32, #tpu.memory_space<vmem>>, vector<1x1x8xf32>
    %8 = vector.shape_cast %7 : vector<1x1x8xf32> to vector<1x8xf32>
    %9 = vector.shape_cast %8 : vector<1x8xf32> to vector<1x8xf32>
    %10 = vector.broadcast %9 : vector<1x8xf32> to vector<8x8xf32>
    %cst_9 = arith.constant 0.000000e+00 : f32
    %11 = vector.broadcast %cst_9 : f32 to vector<8x32xf32>
    %12 = vector.extract_strided_slice %6 {offsets = [0, 0], sizes = [8, 8], strides = [1, 1]} : vector<8x96xf32> to vector<8x8xf32>
    %13 = vector.extract_strided_slice %6 {offsets = [0, 32], sizes = [8, 8], strides = [1, 1]} : vector<8x96xf32> to vector<8x8xf32>
    %14 = vector.extract_strided_slice %6 {offsets = [0, 64], sizes = [8, 8], strides = [1, 1]} : vector<8x96xf32> to vector<8x8xf32>
    %cst_10 = arith.constant dense<0.000000e+00> : vector<8x8xf32>
    %15 = tpu.matmul %12, %13, %cst_10 {dimension_numbers = #tpu.dot_dimension_numbers<[1], [1], [0], [0], [0, 0, 1, 0], [], []>} : vector<8x8xf32>, vector<8x8xf32>, vector<8x8xf32> -> vector<8x8xf32>
    %cst_11 = arith.constant 0.353553385 : f32
    %16 = vector.broadcast %cst_11 : f32 to vector<8x8xf32>
    %17 = arith.mulf %15, %16 : vector<8x8xf32>
    %18 = arith.addf %17, %10 : vector<8x8xf32>
    %cst_12 = arith.constant dense<0xFF800000> : vector<8xf32>
    %19 = vector.multi_reduction <maximumf>, %18, %cst_12 [1] : vector<8x8xf32> to vector<8xf32>
    %20 = vector.shape_cast %19 : vector<8xf32> to vector<8x1xf32>
    %21 = vector.broadcast %20 : vector<8x1xf32> to vector<8x8xf32>
    %22 = arith.subf %18, %21 : vector<8x8xf32>
    %23 = math.exp %22 : vector<8x8xf32>
    %cst_13 = arith.constant dense<0.000000e+00> : vector<8xf32>
    %24 = vector.multi_reduction <add>, %23, %cst_13 [1] : vector<8x8xf32> to vector<8xf32>
    %25 = vector.shape_cast %24 : vector<8xf32> to vector<8x1xf32>
    %26 = vector.broadcast %25 : vector<8x1xf32> to vector<8x8xf32>
    %27 = arith.divf %23, %26 : vector<8x8xf32>
    %cst_14 = arith.constant dense<0.000000e+00> : vector<8x8xf32>
    %28 = tpu.matmul %27, %14, %cst_14 {dimension_numbers = #tpu.dot_dimension_numbers<[1], [0], [0], [1], [0, 0, 1, 1], [], []>} : vector<8x8xf32>, vector<8x8xf32>, vector<8x8xf32> -> vector<8x8xf32>
    %c0_15 = arith.constant 0 : index
    %c0_16 = arith.constant 0 : index
    %29 = vector.load %arg5[%c0_15, %c0_16] : memref<32x32xf32, #tpu.memory_space<vmem>>, vector<8x32xf32>
    %cst_17 = arith.constant dense<0.000000e+00> : vector<8x32xf32>
    %30 = tpu.matmul %28, %29, %cst_17 {dimension_numbers = #tpu.dot_dimension_numbers<[1], [0], [0], [1], [0, 0, 1, 1], [], []>} : vector<8x8xf32>, vector<8x32xf32>, vector<8x32xf32> -> vector<8x32xf32>
    %31 = arith.addf %11, %30 : vector<8x32xf32>
    %32 = vector.extract_strided_slice %6 {offsets = [0, 8], sizes = [8, 8], strides = [1, 1]} : vector<8x96xf32> to vector<8x8xf32>
    %33 = vector.extract_strided_slice %6 {offsets = [0, 40], sizes = [8, 8], strides = [1, 1]} : vector<8x96xf32> to vector<8x8xf32>
    %34 = vector.extract_strided_slice %6 {offsets = [0, 72], sizes = [8, 8], strides = [1, 1]} : vector<8x96xf32> to vector<8x8xf32>
    %cst_18 = arith.constant dense<0.000000e+00> : vector<8x8xf32>
    %35 = tpu.matmul %32, %33, %cst_18 {dimension_numbers = #tpu.dot_dimension_numbers<[1], [1], [0], [0], [0, 0, 1, 0], [], []>} : vector<8x8xf32>, vector<8x8xf32>, vector<8x8xf32> -> vector<8x8xf32>
    %cst_19 = arith.constant 0.353553385 : f32
    %36 = vector.broadcast %cst_19 : f32 to vector<8x8xf32>
    %37 = arith.mulf %35, %36 : vector<8x8xf32>
    %38 = arith.addf %37, %10 : vector<8x8xf32>
    %cst_20 = arith.constant dense<0xFF800000> : vector<8xf32>
    %39 = vector.multi_reduction <maximumf>, %38, %cst_20 [1] : vector<8x8xf32> to vector<8xf32>
    %40 = vector.shape_cast %39 : vector<8xf32> to vector<8x1xf32>
    %41 = vector.broadcast %40 : vector<8x1xf32> to vector<8x8xf32>
    %42 = arith.subf %38, %41 : vector<8x8xf32>
    %43 = math.exp %42 : vector<8x8xf32>
    %cst_21 = arith.constant dense<0.000000e+00> : vector<8xf32>
    %44 = vector.multi_reduction <add>, %43, %cst_21 [1] : vector<8x8xf32> to vector<8xf32>
    %45 = vector.shape_cast %44 : vector<8xf32> to vector<8x1xf32>
    %46 = vector.broadcast %45 : vector<8x1xf32> to vector<8x8xf32>
    %47 = arith.divf %43, %46 : vector<8x8xf32>
    %cst_22 = arith.constant dense<0.000000e+00> : vector<8x8xf32>
    %48 = tpu.matmul %47, %34, %cst_22 {dimension_numbers = #tpu.dot_dimension_numbers<[1], [0], [0], [1], [0, 0, 1, 1], [], []>} : vector<8x8xf32>, vector<8x8xf32>, vector<8x8xf32> -> vector<8x8xf32>
    %c8 = arith.constant 8 : index
    %c0_23 = arith.constant 0 : index
    %49 = vector.load %arg5[%c8, %c0_23] : memref<32x32xf32, #tpu.memory_space<vmem>>, vector<8x32xf32>
    %cst_24 = arith.constant dense<0.000000e+00> : vector<8x32xf32>
    %50 = tpu.matmul %48, %49, %cst_24 {dimension_numbers = #tpu.dot_dimension_numbers<[1], [0], [0], [1], [0, 0, 1, 1], [], []>} : vector<8x8xf32>, vector<8x32xf32>, vector<8x32xf32> -> vector<8x32xf32>
    %51 = arith.addf %31, %50 : vector<8x32xf32>
    %52 = vector.extract_strided_slice %6 {offsets = [0, 16], sizes = [8, 8], strides = [1, 1]} : vector<8x96xf32> to vector<8x8xf32>
    %53 = vector.extract_strided_slice %6 {offsets = [0, 48], sizes = [8, 8], strides = [1, 1]} : vector<8x96xf32> to vector<8x8xf32>
    %54 = vector.extract_strided_slice %6 {offsets = [0, 80], sizes = [8, 8], strides = [1, 1]} : vector<8x96xf32> to vector<8x8xf32>
    %cst_25 = arith.constant dense<0.000000e+00> : vector<8x8xf32>
    %55 = tpu.matmul %52, %53, %cst_25 {dimension_numbers = #tpu.dot_dimension_numbers<[1], [1], [0], [0], [0, 0, 1, 0], [], []>} : vector<8x8xf32>, vector<8x8xf32>, vector<8x8xf32> -> vector<8x8xf32>
    %cst_26 = arith.constant 0.353553385 : f32
    %56 = vector.broadcast %cst_26 : f32 to vector<8x8xf32>
    %57 = arith.mulf %55, %56 : vector<8x8xf32>
    %58 = arith.addf %57, %10 : vector<8x8xf32>
    %cst_27 = arith.constant dense<0xFF800000> : vector<8xf32>
    %59 = vector.multi_reduction <maximumf>, %58, %cst_27 [1] : vector<8x8xf32> to vector<8xf32>
    %60 = vector.shape_cast %59 : vector<8xf32> to vector<8x1xf32>
    %61 = vector.broadcast %60 : vector<8x1xf32> to vector<8x8xf32>
    %62 = arith.subf %58, %61 : vector<8x8xf32>
    %63 = math.exp %62 : vector<8x8xf32>
    %cst_28 = arith.constant dense<0.000000e+00> : vector<8xf32>
    %64 = vector.multi_reduction <add>, %63, %cst_28 [1] : vector<8x8xf32> to vector<8xf32>
    %65 = vector.shape_cast %64 : vector<8xf32> to vector<8x1xf32>
    %66 = vector.broadcast %65 : vector<8x1xf32> to vector<8x8xf32>
    %67 = arith.divf %63, %66 : vector<8x8xf32>
    %cst_29 = arith.constant dense<0.000000e+00> : vector<8x8xf32>
    %68 = tpu.matmul %67, %54, %cst_29 {dimension_numbers = #tpu.dot_dimension_numbers<[1], [0], [0], [1], [0, 0, 1, 1], [], []>} : vector<8x8xf32>, vector<8x8xf32>, vector<8x8xf32> -> vector<8x8xf32>
    %c16 = arith.constant 16 : index
    %c0_30 = arith.constant 0 : index
    %69 = vector.load %arg5[%c16, %c0_30] : memref<32x32xf32, #tpu.memory_space<vmem>>, vector<8x32xf32>
    %cst_31 = arith.constant dense<0.000000e+00> : vector<8x32xf32>
    %70 = tpu.matmul %68, %69, %cst_31 {dimension_numbers = #tpu.dot_dimension_numbers<[1], [0], [0], [1], [0, 0, 1, 1], [], []>} : vector<8x8xf32>, vector<8x32xf32>, vector<8x32xf32> -> vector<8x32xf32>
    %71 = arith.addf %51, %70 : vector<8x32xf32>
    %72 = vector.extract_strided_slice %6 {offsets = [0, 24], sizes = [8, 8], strides = [1, 1]} : vector<8x96xf32> to vector<8x8xf32>
    %73 = vector.extract_strided_slice %6 {offsets = [0, 56], sizes = [8, 8], strides = [1, 1]} : vector<8x96xf32> to vector<8x8xf32>
    %74 = vector.extract_strided_slice %6 {offsets = [0, 88], sizes = [8, 8], strides = [1, 1]} : vector<8x96xf32> to vector<8x8xf32>
    %cst_32 = arith.constant dense<0.000000e+00> : vector<8x8xf32>
    %75 = tpu.matmul %72, %73, %cst_32 {dimension_numbers = #tpu.dot_dimension_numbers<[1], [1], [0], [0], [0, 0, 1, 0], [], []>} : vector<8x8xf32>, vector<8x8xf32>, vector<8x8xf32> -> vector<8x8xf32>
    %cst_33 = arith.constant 0.353553385 : f32
    %76 = vector.broadcast %cst_33 : f32 to vector<8x8xf32>
    %77 = arith.mulf %75, %76 : vector<8x8xf32>
    %78 = arith.addf %77, %10 : vector<8x8xf32>
    %cst_34 = arith.constant dense<0xFF800000> : vector<8xf32>
    %79 = vector.multi_reduction <maximumf>, %78, %cst_34 [1] : vector<8x8xf32> to vector<8xf32>
    %80 = vector.shape_cast %79 : vector<8xf32> to vector<8x1xf32>
    %81 = vector.broadcast %80 : vector<8x1xf32> to vector<8x8xf32>
    %82 = arith.subf %78, %81 : vector<8x8xf32>
    %83 = math.exp %82 : vector<8x8xf32>
    %cst_35 = arith.constant dense<0.000000e+00> : vector<8xf32>
    %84 = vector.multi_reduction <add>, %83, %cst_35 [1] : vector<8x8xf32> to vector<8xf32>
    %85 = vector.shape_cast %84 : vector<8xf32> to vector<8x1xf32>
    %86 = vector.broadcast %85 : vector<8x1xf32> to vector<8x8xf32>
    %87 = arith.divf %83, %86 : vector<8x8xf32>
    %cst_36 = arith.constant dense<0.000000e+00> : vector<8x8xf32>
    %88 = tpu.matmul %87, %74, %cst_36 {dimension_numbers = #tpu.dot_dimension_numbers<[1], [0], [0], [1], [0, 0, 1, 1], [], []>} : vector<8x8xf32>, vector<8x8xf32>, vector<8x8xf32> -> vector<8x8xf32>
    %c24 = arith.constant 24 : index
    %c0_37 = arith.constant 0 : index
    %89 = vector.load %arg5[%c24, %c0_37] : memref<32x32xf32, #tpu.memory_space<vmem>>, vector<8x32xf32>
    %cst_38 = arith.constant dense<0.000000e+00> : vector<8x32xf32>
    %90 = tpu.matmul %88, %89, %cst_38 {dimension_numbers = #tpu.dot_dimension_numbers<[1], [0], [0], [1], [0, 0, 1, 1], [], []>} : vector<8x8xf32>, vector<8x32xf32>, vector<8x32xf32> -> vector<8x32xf32>
    %91 = arith.addf %71, %90 : vector<8x32xf32>
    %c0_39 = arith.constant 0 : index
    %c0_40 = arith.constant 0 : index
    %92 = vector.load %arg6[%c0_39, %c0_40] : memref<3x32xf32, #tpu.memory_space<vmem>>, vector<1x32xf32>
    %93 = vector.broadcast %92 : vector<1x32xf32> to vector<8x32xf32>
    %94 = arith.addf %91, %93 : vector<8x32xf32>
    %95 = arith.addf %94, %1 : vector<8x32xf32>
    %cst_41 = arith.constant dense<0.000000e+00> : vector<8xf32>
    %96 = vector.multi_reduction <add>, %95, %cst_41 [1] : vector<8x32xf32> to vector<8xf32>
    %97 = vector.shape_cast %96 : vector<8xf32> to vector<8x1xf32>
    %cst_42 = arith.constant 3.200000e+01 : f32
    %98 = vector.broadcast %cst_42 : f32 to vector<8x1xf32>
    %99 = arith.divf %97, %98 : vector<8x1xf32>
    %100 = vector.broadcast %99 : vector<8x1xf32> to vector<8x32xf32>
    %101 = arith.subf %95, %100 : vector<8x32xf32>
    %102 = arith.mulf %101, %101 : vector<8x32xf32>
    %cst_43 = arith.constant dense<0.000000e+00> : vector<8xf32>
    %103 = vector.multi_reduction <add>, %102, %cst_43 [1] : vector<8x32xf32> to vector<8xf32>
    %104 = vector.shape_cast %103 : vector<8xf32> to vector<8x1xf32>
    %cst_44 = arith.constant 3.200000e+01 : f32
    %105 = vector.broadcast %cst_44 : f32 to vector<8x1xf32>
    %106 = arith.divf %104, %105 : vector<8x1xf32>
    %107 = vector.broadcast %99 : vector<8x1xf32> to vector<8x32xf32>
    %108 = arith.subf %95, %107 : vector<8x32xf32>
    %cst_45 = arith.constant 9.99999996E-13 : f32
    %109 = vector.broadcast %cst_45 : f32 to vector<8x1xf32>
    %110 = arith.addf %106, %109 : vector<8x1xf32>
    %111 = math.rsqrt %110 : vector<8x1xf32>
    %112 = vector.broadcast %111 : vector<8x1xf32> to vector<8x32xf32>
    %113 = arith.mulf %108, %112 : vector<8x32xf32>
    %c1 = arith.constant 1 : index
    %c0_46 = arith.constant 0 : index
    %114 = vector.load %arg6[%c1, %c0_46] : memref<3x32xf32, #tpu.memory_space<vmem>>, vector<1x32xf32>
    %115 = vector.broadcast %114 : vector<1x32xf32> to vector<8x32xf32>
    %116 = arith.mulf %115, %113 : vector<8x32xf32>
    %c2 = arith.constant 2 : index
    %c0_47 = arith.constant 0 : index
    %117 = vector.load %arg6[%c2, %c0_47] : memref<3x32xf32, #tpu.memory_space<vmem>>, vector<1x32xf32>
    %118 = vector.broadcast %117 : vector<1x32xf32> to vector<8x32xf32>
    %119 = arith.addf %116, %118 : vector<8x32xf32>
    %c0_48 = arith.constant 0 : index
    %c0_49 = arith.constant 0 : index
    %c0_50 = arith.constant 0 : index
    %120 = vector.load %arg7[%c0_48, %c0_49, %c0_50] : memref<1x8x32xf32, #tpu.memory_space<vmem>>, vector<1x8x32xf32>
    %121 = vector.shape_cast %120 : vector<1x8x32xf32> to vector<8x32xf32>
    %122 = vector.shape_cast %119 : vector<8x32xf32> to vector<1x8x32xf32>
    tpu.vector_store %arg7[%c0_48, %c0_49, %c0_50], %122 {strides = array<i32>} : memref<1x8x32xf32, #tpu.memory_space<vmem>>, vector<1x8x32xf32>,
    return
  }
  func.func @transform_0(%arg0: i32) -> (i32, i32, i32) {
    %c0_i32 = arith.constant 0 : i32
    %c0_i32_0 = arith.constant 0 : i32
    %c0_i32_1 = arith.constant 0 : i32
    return %arg0, %c0_i32, %c0_i32_0 : i32, i32, i32
  }
  func.func @transform_1(%arg0: i32) -> (i32, i32, i32) {
    %c0_i32 = arith.constant 0 : i32
    %c0_i32_0 = arith.constant 0 : i32
    %c0_i32_1 = arith.constant 0 : i32
    return %arg0, %c0_i32, %c0_i32_0 : i32, i32, i32
  }
  func.func @transform_2(%arg0: i32) -> (i32, i32) {
    %c0_i32 = arith.constant 0 : i32
    %c0_i32_0 = arith.constant 0 : i32
    %c0_i32_1 = arith.constant 0 : i32
    return %c0_i32, %c0_i32_0 : i32, i32
  }
  func.func @transform_3(%arg0: i32) -> (i32, i32) {
    %c0_i32 = arith.constant 0 : i32
    %c0_i32_0 = arith.constant 0 : i32
    %c0_i32_1 = arith.constant 0 : i32
    return %c0_i32, %c0_i32_0 : i32, i32
  }
  func.func @transform_4(%arg0: i32) -> (i32, i32) {
    %c0_i32 = arith.constant 0 : i32
    %c0_i32_0 = arith.constant 0 : i32
    %c0_i32_1 = arith.constant 0 : i32
    return %c0_i32, %c0_i32_0 : i32, i32
  }
  func.func @transform_5(%arg0: i32) -> (i32, i32) {
    %c0_i32 = arith.constant 0 : i32
    %c0_i32_0 = arith.constant 0 : i32
    %c0_i32_1 = arith.constant 0 : i32
    return %c0_i32, %c0_i32_0 : i32, i32
  }
  func.func @transform_6(%arg0: i32) -> (i32, i32, i32) {
    %c0_i32 = arith.constant 0 : i32
    %c0_i32_0 = arith.constant 0 : i32
    %c0_i32_1 = arith.constant 0 : i32
    return %arg0, %c0_i32, %c0_i32_0 : i32, i32, i32
  }
}

</mosaic_0001>

<llo_original>
// kernel: tpu_custom_call.1
$region0: #{tpu_custom_call.1}
  #allocation0 [shape = 'u32[]', space=smem, size = 0x4, offset = 0x4, fixed_abs, tag = 'smem constant byte address 0x4 - core index']
  #allocation1 [shape = 'u32[144,128]{1,0:T(1,128)}', space=vmem, size = 0x12000, scoped, tag = 'internal scratch']
  %s0 = inlined_call_operand.hbm [shape: f32[2,8,32], index: 0, kind: input, shape index: {}]
  %s1 = inlined_call_operand.hbm [shape: f32[2,1,8], index: 1, kind: input, shape index: {}]
  %s2 = inlined_call_operand.hbm [shape: f32[32,96], index: 2, kind: input, shape index: {}]
  %s3 = inlined_call_operand.vmem [shape: f32[1,96], index: 3, kind: input, shape index: {}]
  %s4 = inlined_call_operand.hbm [shape: f32[32,32], index: 4, kind: input, shape index: {}]
  %s5 = inlined_call_operand.vmem [shape: f32[3,32], index: 5, kind: input, shape index: {}]
  %s6 = inlined_call_operand.hbm [shape: f32[2,8,32], index: 6, kind: output, shape index: {}]
  %s7 = sld [smem:[#allocation0]]
  $region73: #{tpu_custom_call.1} parent=0
    _
  %s9 = ssub.s32 1, %s7
  %s10 = scalar_select 0, %s9, %s7
  $region1: #{tpu_custom_call.1} parent=0
    #allocation2 [shape = 'u8[8192]{0}', space=vmem, size = 0x2000, scoped, tag = 'input window, operand 0']
    #allocation3 [shape = 's32[2]{0}', space=sflag, size = 0x8, scoped, tag = 'scoped memory for tpu_custom_call.1']
    #allocation4 [shape = 's32[2]{0}', space=sflag, size = 0x8, scoped, tag = 'scoped memory for tpu_custom_call.1']
    #allocation5 [shape = 'u8[1024]{0}', space=vmem, size = 0x400, scoped, tag = 'input window, operand 1']
    #allocation6 [shape = 's32[2]{0}', space=sflag, size = 0x8, scoped, tag = 'scoped memory for tpu_custom_call.1']
    #allocation7 [shape = 'u8[16384]{0}', space=vmem, size = 0x4000, scoped, tag = 'input window, operand 2, single buffered']
    #allocation8 [shape = 'u8[16384]{0}', space=vmem, size = 0x4000, scoped, tag = 'input window, operand 4, single buffered']
    #allocation9 [shape = 's32[1]{0}', space=sflag, size = 0x4, scoped, tag = 'scoped memory for tpu_custom_call.1']
    #allocation10 [shape = 'u8[8192]{0}', space=vmem, size = 0x2000, scoped, tag = 'output window, operand 0']
    %11 = vsyncpa [#allocation3], 0
    %s12 = scalar_lea.sflag [#allocation3], 1
    %13 = vsyncpa %s12, 0
    %14 = vsyncpa [#allocation6], 0
    %s15 = scalar_lea.sflag [#allocation6], 1
    %16 = vsyncpa %s15, 0
    %17 = vsyncpa [#allocation9], 0
    %18 = vsyncpa [#allocation4], 0
    %s19 = scalar_lea.sflag [#allocation4], 1
    %20 = vsyncpa %s19, 0
    loop: start=0, step=1, limit=4
    $region2: #{tpu_custom_call.1} parent=1 // loop_pre_header
      _
    $region3: #{tpu_custom_call.1} parent=1 // loop_header
      %s22 = sphi 0, %s26
      %p23 = scmp.ge.s32.totalorder %s22, 4
      %s32 = sphi 0, %s34
      %s35 = sphi 0, %s32
      %s36 = sphi 0, %s35
      %s52 = sphi 0, %s36
      %s58 = sphi 0, %s60
      %s61 = sphi 0, %s58
      %s62 = sphi 0, %s61
      %s78 = sphi 0, %s62
      %s82 = sphi 0, %s82
      %s84 = sphi 0, %s82
      %s85 = sphi 0, %s84
      %s99 = sphi 0, %s85
      %s103 = sphi 0, %s103
      %s105 = sphi 0, %s103
      %s106 = sphi 0, %s105
      %s120 = sphi 0, %s106
      %s124 = sphi 0, %s124
      %s126 = sphi 0, %s124
      %s127 = sphi 0, %s126
      %s141 = sphi 0, %s127
      %s145 = sphi 0, %s145
      %s147 = sphi 0, %s145
      %s148 = sphi 0, %s147
      %s162 = sphi 0, %s148
      %s168 = sphi 0, %s170
      %s171 = sphi 0, %s168
      %s172 = sphi 0, %s171
      %s188 = sphi 0, %s172
    $region4: #{tpu_custom_call.1} parent=1 // loop_header_branch
      %25 = sbr.rel (%p23) target = $region8
    $region5: #{tpu_custom_call.1} parent=1 // loop_body
      %s27 = ssub.s32 %s22, 1
      %s28 = ssub.s32 %s22, 2
      %s29 = sadd.s32 %s22, 1
      %s30 = ssub.s32 %s22, %s29
      %p31 = scmp.eq.s32.totalorder %s30, 0
      %s33 = sadd.s32 %s32, 1
      %s34 = scalar_select %p31, %s32, %s33
      %p37 = pneg %p31
      %p38 = scmp.eq.s32.totalorder %s22, 1
      %p39 = por %p37, %p38
      %p40 = scmp.ne.s32.totalorder %s32, %s35
      %p41 = scmp.eq.s32.totalorder %s22, 0
      %p42 = por %p40, %p41
      %p43 = scmp.ne.s32.totalorder %s32, %s35
      %p44 = scmp.eq.s32.totalorder %s27, 1
      %p45 = por %p43, %p44
      %p46 = scmp.ne.s32.totalorder %s35, %s36
      %p47 = scmp.eq.s32.totalorder %s27, 0
      %p48 = por %p46, %p47
      %p49 = scmp.ne.s32.totalorder %s35, %s36
      %p50 = scmp.eq.s32.totalorder %s28, 1
      %p51 = por %p49, %p50
      %p53 = scmp.ne.s32.totalorder %s36, %s52
      %p54 = scmp.eq.s32.totalorder %s28, 0
      %p55 = por %p53, %p54
      %s56 = ssub.s32 %s22, %s29
      %p57 = scmp.eq.s32.totalorder %s56, 0
      %s59 = sadd.s32 %s58, 1
      %s60 = scalar_select %p57, %s58, %s59
      %p63 = pneg %p57
      %p64 = scmp.eq.s32.totalorder %s22, 1
      %p65 = por %p63, %p64
      %p66 = scmp.ne.s32.totalorder %s58, %s61
      %p67 = scmp.eq.s32.totalorder %s22, 0
      %p68 = por %p66, %p67
      %p69 = scmp.ne.s32.totalorder %s58, %s61
      %p70 = scmp.eq.s32.totalorder %s27, 1
      %p71 = por %p69, %p70
      %p72 = scmp.ne.s32.totalorder %s61, %s62
      %p73 = scmp.eq.s32.totalorder %s27, 0
      %p74 = por %p72, %p73
      %p75 = scmp.ne.s32.totalorder %s61, %s62
      %p76 = scmp.eq.s32.totalorder %s28, 1
      %p77 = por %p75, %p76
      %p79 = scmp.ne.s32.totalorder %s62, %s78
      %p80 = scmp.eq.s32.totalorder %s28, 0
      %p81 = por %p79, %p80
      %s83 = sadd.s32 %s82, 1
      %p86 = scmp.eq.s32.totalorder %s22, 1
      %p87 = scmp.ne.s32.totalorder %s82, %s84
      %p88 = scmp.eq.s32.totalorder %s22, 0
      %p89 = por %p87, %p88
      %p90 = scmp.ne.s32.totalorder %s82, %s84
      %p91 = scmp.eq.s32.totalorder %s27, 1
      %p92 = por %p90, %p91
      %p93 = scmp.ne.s32.totalorder %s84, %s85
      %p94 = scmp.eq.s32.totalorder %s27, 0
      %p95 = por %p93, %p94
      %p96 = scmp.ne.s32.totalorder %s84, %s85
      %p97 = scmp.eq.s32.totalorder %s28, 1
      %p98 = por %p96, %p97
      %p100 = scmp.ne.s32.totalorder %s85, %s99
      %p101 = scmp.eq.s32.totalorder %s28, 0
      %p102 = por %p100, %p101
      %s104 = sadd.s32 %s103, 1
      %p107 = scmp.eq.s32.totalorder %s22, 1
      %p108 = scmp.ne.s32.totalorder %s103, %s105
      %p109 = scmp.eq.s32.totalorder %s22, 0
      %p110 = por %p108, %p109
      %p111 = scmp.ne.s32.totalorder %s103, %s105
      %p112 = scmp.eq.s32.totalorder %s27, 1
      %p113 = por %p111, %p112
      %p114 = scmp.ne.s32.totalorder %s105, %s106
      %p115 = scmp.eq.s32.totalorder %s27, 0
      %p116 = por %p114, %p115
      %p117 = scmp.ne.s32.totalorder %s105, %s106
      %p118 = scmp.eq.s32.totalorder %s28, 1
      %p119 = por %p117, %p118
      %p121 = scmp.ne.s32.totalorder %s106, %s120
      %p122 = scmp.eq.s32.totalorder %s28, 0
      %p123 = por %p121, %p122
      %s125 = sadd.s32 %s124, 1
      %p128 = scmp.eq.s32.totalorder %s22, 1
      %p129 = scmp.ne.s32.totalorder %s124, %s126
      %p130 = scmp.eq.s32.totalorder %s22, 0
      %p131 = por %p129, %p130
      %p132 = scmp.ne.s32.totalorder %s124, %s126
      %p133 = scmp.eq.s32.totalorder %s27, 1
      %p134 = por %p132, %p133
      %p135 = scmp.ne.s32.totalorder %s126, %s127
      %p136 = scmp.eq.s32.totalorder %s27, 0
      %p137 = por %p135, %p136
      %p138 = scmp.ne.s32.totalorder %s126, %s127
      %p139 = scmp.eq.s32.totalorder %s28, 1
      %p140 = por %p138, %p139
      %p142 = scmp.ne.s32.totalorder %s127, %s141
      %p143 = scmp.eq.s32.totalorder %s28, 0
      %p144 = por %p142, %p143
      %s146 = sadd.s32 %s145, 1
      %p149 = scmp.eq.s32.totalorder %s22, 1
      %p150 = scmp.ne.s32.totalorder %s145, %s147
      %p151 = scmp.eq.s32.totalorder %s22, 0
      %p152 = por %p150, %p151
      %p153 = scmp.ne.s32.totalorder %s145, %s147
      %p154 = scmp.eq.s32.totalorder %s27, 1
      %p155 = por %p153, %p154
      %p156 = scmp.ne.s32.totalorder %s147, %s148
      %p157 = scmp.eq.s32.totalorder %s27, 0
      %p158 = por %p156, %p157
      %p159 = scmp.ne.s32.totalorder %s147, %s148
      %p160 = scmp.eq.s32.totalorder %s28, 1
      %p161 = por %p159, %p160
      %p163 = scmp.ne.s32.totalorder %s148, %s162
      %p164 = scmp.eq.s32.totalorder %s28, 0
      %p165 = por %p163, %p164
      %s166 = ssub.s32 %s22, %s29
      %p167 = scmp.eq.s32.totalorder %s166, 0
      %s169 = sadd.s32 %s168, 1
      %s170 = scalar_select %p167, %s168, %s169
      %p173 = pneg %p167
      %p174 = scmp.eq.s32.totalorder %s22, 1
      %p175 = por %p173, %p174
      %p176 = scmp.ne.s32.totalorder %s168, %s171
      %p177 = scmp.eq.s32.totalorder %s22, 0
      %p178 = por %p176, %p177
      %p179 = scmp.ne.s32.totalorder %s168, %s171
      %p180 = scmp.eq.s32.totalorder %s27, 1
      %p181 = por %p179, %p180
      %p182 = scmp.ne.s32.totalorder %s171, %s172
      %p183 = scmp.eq.s32.totalorder %s27, 0
      %p184 = por %p182, %p183
      %p185 = scmp.ne.s32.totalorder %s171, %s172
      %p186 = scmp.eq.s32.totalorder %s28, 1
      %p187 = por %p185, %p186
      %p189 = scmp.ne.s32.totalorder %s172, %s188
      %p190 = scmp.eq.s32.totalorder %s28, 0
      %p191 = por %p189, %p190
      %p192 = scmp.le.s32.totalorder 1, %s22
      %p193 = scmp.lt.s32.totalorder %s22, 3
      %p194 = pnand %p192, %p193
      %p195 = pneg %p194
      // Predicated region
      $region9: #{tpu_custom_call.1} parent=5 // pred_check
        _
      $region10: #{tpu_custom_call.1} parent=5 // pred_check_branch
        %197 = sbr.rel (%p194) target = $region12
      $region11: #{tpu_custom_call.1} parent=5 // pred_region
        %s198 = ssub.s32 %s22, 1
        // Predicated region
        $region13: #{tpu_custom_call.1} parent=11 // pred_check
          %p199 = pneg %p95
        $region14: #{tpu_custom_call.1} parent=11 // pred_check_branch
          %201 = sbr.rel (%p199) target = $region16
        $region15: #{tpu_custom_call.1} parent=11 // pred_region
          %s203 = ssub.s32 512, 512
          %204 = vsyncadd [#allocation6], %s203
          %s205 = sshll.u32 [#allocation7], 4
          %s206 = int_to_ptr.vmem [resolvable:$true] %s205
          %211 = dma.hbm_to_vmem [thread:$0]  %s2, 512, %s206, [#allocation6], 128, 128, 8
        $region16: #{tpu_custom_call.1} parent=11 // pred_fallthru
          _
        // Predicated region
        $region17: #{tpu_custom_call.1} parent=11 // pred_check
          %p212 = pneg %p116
        $region18: #{tpu_custom_call.1} parent=11 // pred_check_branch
          %214 = sbr.rel (%p212) target = $region20
        $region19: #{tpu_custom_call.1} parent=11 // pred_region
          _
        $region20: #{tpu_custom_call.1} parent=11 // pred_fallthru
          _
        // Predicated region
        $region21: #{tpu_custom_call.1} parent=11 // pred_check
          %p215 = pneg %p137
        $region22: #{tpu_custom_call.1} parent=11 // pred_check_branch
          %217 = sbr.rel (%p215) target = $region24
        $region23: #{tpu_custom_call.1} parent=11 // pred_region
          %s219 = ssub.s32 512, 512
          %220 = vsyncadd [#allocation9], %s219
          %s221 = sshll.u32 [#allocation8], 4
          %s222 = int_to_ptr.vmem [resolvable:$true] %s221
          %227 = dma.hbm_to_vmem [thread:$0]  %s4, 512, %s222, [#allocation9], 128, 128, 8
        $region24: #{tpu_custom_call.1} parent=11 // pred_fallthru
          _
        // Predicated region
        $region25: #{tpu_custom_call.1} parent=11 // pred_check
          %p228 = pneg %p158
        $region26: #{tpu_custom_call.1} parent=11 // pred_check_branch
          %230 = sbr.rel (%p228) target = $region28
        $region27: #{tpu_custom_call.1} parent=11 // pred_region
          _
        $region28: #{tpu_custom_call.1} parent=11 // pred_fallthru
          _
      $region12: #{tpu_custom_call.1} parent=5 // pred_fallthru
        _
      %p231 = scmp.lt.s32.totalorder %s22, 2
      // Predicated region
      $region29: #{tpu_custom_call.1} parent=5 // pred_check
        %p232 = pneg %p231
      $region30: #{tpu_custom_call.1} parent=5 // pred_check_branch
        %234 = sbr.rel (%p232) target = $region32
      $region31: #{tpu_custom_call.1} parent=5 // pred_region
        // Predicated region
        $region33: #{tpu_custom_call.1} parent=31 // pred_check
          %p235 = pneg %p42
        $region34: #{tpu_custom_call.1} parent=31 // pred_check_branch
          %237 = sbr.rel (%p235) target = $region36
        $region35: #{tpu_custom_call.1} parent=31 // pred_region
          %s238 = sand.u32 %s32, 1
          %s239 = scalar_lea.sflag [#allocation3], %s238
          %s240 = sand.u32 %s32, 1
          %s241 = smul.addr %s240, 8
          %s242 = scalar_lea.vmem [#allocation2], %s241
          %s244 = ssub.s32 128, 128
          %245 = vsyncadd %s239, %s244
          %s246 = smul.addr %s22, 128
          %s247 = scalar_lea.hbm %s0, %s246
          %s249 = sshll.u32 %s242, 4
          %s250 = int_to_ptr.vmem [resolvable:$true] %s249
          %252 = dma.hbm_to_vmem [thread:$0]  %s247, 128, %s250, %s239
        $region36: #{tpu_custom_call.1} parent=31 // pred_fallthru
          _
        // Predicated region
        $region37: #{tpu_custom_call.1} parent=31 // pred_check
          %p253 = pneg %p68
        $region38: #{tpu_custom_call.1} parent=31 // pred_check_branch
          %255 = sbr.rel (%p253) target = $region40
        $region39: #{tpu_custom_call.1} parent=31 // pred_region
          %s256 = sand.u32 %s22, 1
          %s257 = scalar_lea.sflag [#allocation6], %s256
          %s258 = sand.u32 %s58, 1
          %s259 = scalar_lea.vmem [#allocation5], %s258
          %s261 = ssub.s32 16, 16
          %262 = vsyncadd %s257, %s261
          %s263 = smul.addr %s22, 16
          %s264 = scalar_lea.hbm %s1, %s263
          %s266 = sshll.u32 %s259, 4
          %s267 = int_to_ptr.vmem [resolvable:$true] %s266
          %269 = dma.hbm_to_vmem [thread:$0]  %s264, 16, %s267, %s257
        $region40: #{tpu_custom_call.1} parent=31 // pred_fallthru
          _
      $region32: #{tpu_custom_call.1} parent=5 // pred_fallthru
        _
      %p270 = scmp.le.s32.totalorder 1, %s22
      %p271 = scmp.lt.s32.totalorder %s22, 3
      %p272 = pnand %p270, %p271
      %p273 = pneg %p272
      // Predicated region
      $region41: #{tpu_custom_call.1} parent=5 // pred_check
        _
      $region42: #{tpu_custom_call.1} parent=5 // pred_check_branch
        %275 = sbr.rel (%p272) target = $region44
      $region43: #{tpu_custom_call.1} parent=5 // pred_region
        %s276 = ssub.s32 %s22, 1
        %s277 = sand.u32 %s35, 1
        %s278 = scalar_lea.sflag [#allocation3], %s277
        %s279 = sand.u32 %s35, 1
        %s280 = smul.addr %s279, 8
        %s281 = scalar_lea.vmem [#allocation2], %s280
        // Predicated region
        $region45: #{tpu_custom_call.1} parent=43 // pred_check
          %p282 = pneg %p48
        $region46: #{tpu_custom_call.1} parent=43 // pred_check_branch
          %284 = sbr.rel (%p282) target = $region48
        $region47: #{tpu_custom_call.1} parent=43 // pred_region
          %285 = dma.done %s278, 128
        $region48: #{tpu_custom_call.1} parent=43 // pred_fallthru
          _
        %s286 = sand.u32 %s27, 1
        %s287 = scalar_lea.sflag [#allocation6], %s286
        %s288 = sand.u32 %s61, 1
        %s289 = scalar_lea.vmem [#allocation5], %s288
        // Predicated region
        $region49: #{tpu_custom_call.1} parent=43 // pred_check
          %p290 = pneg %p74
        $region50: #{tpu_custom_call.1} parent=43 // pred_check_branch
          %292 = sbr.rel (%p290) target = $region52
        $region51: #{tpu_custom_call.1} parent=43 // pred_region
          %293 = dma.done %s287, 16
        $region52: #{tpu_custom_call.1} parent=43 // pred_fallthru
          _
        // Predicated region
        $region53: #{tpu_custom_call.1} parent=43 // pred_check
          %p294 = pneg %p95
        $region54: #{tpu_custom_call.1} parent=43 // pred_check_branch
          %296 = sbr.rel (%p294) target = $region56
        $region55: #{tpu_custom_call.1} parent=43 // pred_region
          %297 = dma.done [#allocation6], 512
        $region56: #{tpu_custom_call.1} parent=43 // pred_fallthru
          _
        // Predicated region
        $region57: #{tpu_custom_call.1} parent=43 // pred_check
          %p298 = pneg %p137
        $region58: #{tpu_custom_call.1} parent=43 // pred_check_branch
          %300 = sbr.rel (%p298) target = $region60
        $region59: #{tpu_custom_call.1} parent=43 // pred_region
          %301 = dma.done [#allocation9], 512
        $region60: #{tpu_custom_call.1} parent=43 // pred_fallthru
          _
        %s302 = sand.u32 %s35, 1
        %s303 = scalar_lea.sflag [#allocation3], %s302
        %s304 = sand.u32 %s35, 1
        %s305 = smul.addr %s304, 8
        %s306 = scalar_lea.vmem [#allocation2], %s305
        %p307 = pneg %p48
        %p308 = pneg %p45
        %s309 = sand.u32 %s27, 1
        %s310 = scalar_lea.sflag [#allocation6], %s309
        %s311 = sand.u32 %s61, 1
        %s312 = scalar_lea.vmem [#allocation5], %s311
        %p313 = pneg %p74
        %p314 = pneg %p71
        %p315 = pneg %p95
        %p316 = pneg %p92
        %p317 = pneg %p116
        %p318 = pneg %p113
        %p319 = pneg %p137
        %p320 = pneg %p134
        %p321 = pneg %p158
        %p322 = pneg %p155
        %p323 = pneg %p184
        %p324 = pneg %p181
        %s325 = sand.u32 %s171, 1
        %s326 = scalar_lea.sflag [#allocation4], %s325
        %s327 = sand.u32 %s171, 1
        %s328 = smul.addr %s327, 8
        %s329 = scalar_lea.vmem [#allocation10], %s328
        %v330 = vld [vmem:[%s281] sm:$0xff]
        %v331 = vld [vmem:[#allocation7] sm:$0xff]
        %v332 = vld [vmem:[#allocation7 + $0x8] sm:$0xff]
        %v333 = vld [vmem:[#allocation7 + $0x10] sm:$0xff]
        %v334 = vld [vmem:[#allocation7 + $0x18] sm:$0xff]
        %v335 = vld [vmem:[%s3] sm:$0x1]
        %v337 = vlaneseq
        %v338 = vshrl.u32 %v337, 7
        %v339 = vsub.s32 0, %v338
        %v340 = vrot.slane %v335, %v339
        %vm342 = vcmask 261120
        %v344 = vsel %vm342, %v330, 0
        %346 = vmatprep.subr.mxu0 0.0
        %347 = vmatpush1.msra.mxu0 0.0
        %348 = vmatprep.subr.mxu0 0.0
        %349 = vmatpush1.msra.mxu0 0.0
        %350 = vmatprep.subr.mxu0 0.0
        %351 = vmatpush1.msra.mxu0 0.0
        %352 = vmatprep.subr.mxu0 0.0
        %353 = vmatpush1.msra.mxu0 0.0
        %354 = vmatprep.subr.mxu0 0.0
        %355 = vmatpush1.msra.mxu0 0.0
        %356 = vmatprep.subr.mxu0 0.0
        %357 = vmatpush1.msra.mxu0 0.0
        %358 = vmatprep.subr.mxu0 0.0
        %359 = vmatpush1.msra.mxu0 0.0
        %360 = vmatprep.subr.mxu0 0.0
        %361 = vmatpush1.msra.mxu0 0.0
        %362 = vmatprep.subr.mxu0 0.0
        %363 = vmatpush1.msra.mxu0 0.0
        %364 = vmatprep.subr.mxu0 0.0
        %365 = vmatpush1.msra.mxu0 0.0
        %366 = vmatprep.subr.mxu0 0.0
        %367 = vmatpush1.msra.mxu0 0.0
        %368 = vmatprep.subr.mxu0 0.0
        %369 = vmatpush1.msra.mxu0 0.0
        %370 = vmatprep.subr.mxu0 0.0
        %371 = vmatpush1.msra.mxu0 %v334
        %372 = vmatprep.subr.mxu0 0.0
        %373 = vmatpush1.msra.mxu0 %v333
        %374 = vmatprep.subr.mxu0 0.0
        %375 = vmatpush1.msra.mxu0 %v332
        %376 = vmatprep.subr.mxu0 0.0
        %377 = vmatpush1.msra.mxu0 %v331
        %378 = vmatprep.subr.mxu0 0.0
        %379 = vmatpush2.msra.mxu0 0.0
        %380 = vmatprep.subr.mxu0 0.0
        %381 = vmatpush2.msra.mxu0 0.0
        %382 = vmatprep.subr.mxu0 0.0
        %383 = vmatpush2.msra.mxu0 0.0
        %384 = vmatprep.subr.mxu0 0.0
        %385 = vmatpush2.msra.mxu0 0.0
        %386 = vmatprep.subr.mxu0 0.0
        %387 = vmatpush2.msra.mxu0 0.0
        %388 = vmatprep.subr.mxu0 0.0
        %389 = vmatpush2.msra.mxu0 0.0
        %390 = vmatprep.subr.mxu0 0.0
        %391 = vmatpush2.msra.mxu0 0.0
        %392 = vmatprep.subr.mxu0 0.0
        %393 = vmatpush2.msra.mxu0 0.0
        %394 = vmatprep.subr.mxu0 0.0
        %395 = vmatpush2.msra.mxu0 0.0
        %396 = vmatprep.subr.mxu0 0.0
        %397 = vmatpush2.msra.mxu0 0.0
        %398 = vmatprep.subr.mxu0 0.0
        %399 = vmatpush2.msra.mxu0 0.0
        %400 = vmatprep.subr.mxu0 0.0
        %401 = vmatpush2.msra.mxu0 0.0
        %402 = vmatprep.subr.mxu0 0.0
        %403 = vmatpush2.msra.mxu0 0.0
        %404 = vmatprep.subr.mxu0 0.0
        %405 = vmatpush2.msra.mxu0 0.0
        %406 = vmatprep.subr.mxu0 0.0
        %407 = vmatpush2.msra.mxu0 0.0
        %408 = vmatprep.subr.mxu0 0.0
        %409 = vmatpush2.msra.mxu0 0.0
        %410 = vmatprep.mubr.f32.mxu0 0.0
        %411 = vmatmul.mubr.f32.gmra.mxu0 %v344
        %v412 = vpop.f32.mrf.mxu0
        %v413 = vadd.f32 %v340, %v412
        %v414 = vpop.f32.mrf.mxu0
        %415 = vdwg.mxu0
        %v416 = vld [vmem:[%s289] sm:$0x1]
        %v418 = vlaneseq
        %v419 = vshrl.u32 %v418, 7
        %v420 = vsub.s32 0, %v419
        %v421 = vrot.slane %v416, %v420
        %424 = vrot.lane.b32.xlu0 %v413, 96
        %v425 = vpop.permute.xlu0 %424
        %vm426 = vcmask 64512
        %v427 = vsel %vm426, %v413, 0
        %v429 = vsel %vm426, %v425, 0
        %431 = vmatprep.subr.mxu0 0.0
        %432 = vmatpush1.xpose.msra.mxu0 0.0
        %433 = vmatprep.subr.mxu0 0.0
        %434 = vmatpush1.xpose.msra.mxu0 0.0
        %435 = vmatprep.subr.mxu0 0.0
        %436 = vmatpush1.xpose.msra.mxu0 0.0
        %437 = vmatprep.subr.mxu0 0.0
        %438 = vmatpush1.xpose.msra.mxu0 0.0
        %439 = vmatprep.subr.mxu0 0.0
        %440 = vmatpush1.xpose.msra.mxu0 0.0
        %441 = vmatprep.subr.mxu0 0.0
        %442 = vmatpush1.xpose.msra.mxu0 0.0
        %443 = vmatprep.subr.mxu0 0.0
        %444 = vmatpush1.xpose.msra.mxu0 0.0
        %445 = vmatprep.subr.mxu0 0.0
        %446 = vmatpush1.xpose.msra.mxu0 0.0
        %447 = vmatprep.subr.mxu0 0.0
        %448 = vmatpush1.xpose.msra.mxu0 0.0
        %449 = vmatprep.subr.mxu0 0.0
        %450 = vmatpush1.xpose.msra.mxu0 0.0
        %451 = vmatprep.subr.mxu0 0.0
        %452 = vmatpush1.xpose.msra.mxu0 0.0
        %453 = vmatprep.subr.mxu0 0.0
        %454 = vmatpush1.xpose.msra.mxu0 0.0
        %455 = vmatprep.subr.mxu0 0.0
        %456 = vmatpush1.xpose.msra.mxu0 0.0
        %457 = vmatprep.subr.mxu0 0.0
        %458 = vmatpush1.xpose.msra.mxu0 0.0
        %459 = vmatprep.subr.mxu0 0.0
        %460 = vmatpush1.xpose.msra.mxu0 0.0
        %461 = vmatprep.subr.mxu0 0.0
        %462 = vmatpush1.xpose.msra.mxu0 %v429
        %463 = vmatprep.subr.mxu0 0.0
        %464 = vmatpush2.xpose.msra.mxu0 0.0
        %465 = vmatprep.subr.mxu0 0.0
        %466 = vmatpush2.xpose.msra.mxu0 0.0
        %467 = vmatprep.subr.mxu0 0.0
        %468 = vmatpush2.xpose.msra.mxu0 0.0
        %469 = vmatprep.subr.mxu0 0.0
        %470 = vmatpush2.xpose.msra.mxu0 0.0
        %471 = vmatprep.subr.mxu0 0.0
        %472 = vmatpush2.xpose.msra.mxu0 0.0
        %473 = vmatprep.subr.mxu0 0.0
        %474 = vmatpush2.xpose.msra.mxu0 0.0
        %475 = vmatprep.subr.mxu0 0.0
        %476 = vmatpush2.xpose.msra.mxu0 0.0
        %477 = vmatprep.subr.mxu0 0.0
        %478 = vmatpush2.xpose.msra.mxu0 0.0
        %479 = vmatprep.subr.mxu0 0.0
        %480 = vmatpush2.xpose.msra.mxu0 0.0
        %481 = vmatprep.subr.mxu0 0.0
        %482 = vmatpush2.xpose.msra.mxu0 0.0
        %483 = vmatprep.subr.mxu0 0.0
        %484 = vmatpush2.xpose.msra.mxu0 0.0
        %485 = vmatprep.subr.mxu0 0.0
        %486 = vmatpush2.xpose.msra.mxu0 0.0
        %487 = vmatprep.subr.mxu0 0.0
        %488 = vmatpush2.xpose.msra.mxu0 0.0
        %489 = vmatprep.subr.mxu0 0.0
        %490 = vmatpush2.xpose.msra.mxu0 0.0
        %491 = vmatprep.subr.mxu0 0.0
        %492 = vmatpush2.xpose.msra.mxu0 0.0
        %493 = vmatprep.subr.mxu0 0.0
        %494 = vmatpush2.xpose.msra.mxu0 0.0
        %495 = vmatprep.mubr.f32.mxu0 0.0
        %496 = vmatmul.mubr.f32.gmra.mxu0 %v427
        %v497 = vpop.f32.mrf.mxu0
        %v498 = vadd.f32 0.0, %v497
        %v499 = vpop.f32.mrf.mxu0
        %500 = vdwg.mxu0
        %v501 = vmul.f32 %v498, 0.35355338
        %v502 = vadd.f32 %v501, %v421
        %v503 = vsel %vm426, %v502, -inf
        %504 = vmax.xlane.f32.xlu0 %v503
        %v505 = vpop.xlane.xlu0 %504
        %v506 = vsub.f32 %v502, %v505
        %v507 = vmul.f32 %v506, 1.442695
        %v508 = vpow.pop %v507
        %v509 = vsel %vm426, %v508, 0.0
        %510 = vadd.xlane.f32.xlu0 %v509
        %v511 = vpop.xlane.xlu0 %510
        %v512 = vrcp.pop %v511
        %v513 = vmul.f32 %v508, %v512
        %514 = vrot.lane.b32.xlu0 %v413, 64
        %v515 = vpop.permute.xlu0 %514
        %v518 = vsel %vm426, %v513, 0
        %520 = vmatprep.subr.mxu0 0.0
        %521 = vmatpush1.msra.mxu0 0.0
        %522 = vmatprep.subr.mxu0 0.0
        %523 = vmatpush1.msra.mxu0 0.0
        %524 = vmatprep.subr.mxu0 0.0
        %525 = vmatpush1.msra.mxu0 0.0
        %526 = vmatprep.subr.mxu0 0.0
        %527 = vmatpush1.msra.mxu0 0.0
        %528 = vmatprep.subr.mxu0 0.0
        %529 = vmatpush1.msra.mxu0 0.0
        %530 = vmatprep.subr.mxu0 0.0
        %531 = vmatpush1.msra.mxu0 0.0
        %532 = vmatprep.subr.mxu0 0.0
        %533 = vmatpush1.msra.mxu0 0.0
        %534 = vmatprep.subr.mxu0 0.0
        %535 = vmatpush1.msra.mxu0 0.0
        %536 = vmatprep.subr.mxu0 0.0
        %537 = vmatpush1.msra.mxu0 0.0
        %538 = vmatprep.subr.mxu0 0.0
        %539 = vmatpush1.msra.mxu0 0.0
        %540 = vmatprep.subr.mxu0 0.0
        %541 = vmatpush1.msra.mxu0 0.0
        %542 = vmatprep.subr.mxu0 0.0
        %543 = vmatpush1.msra.mxu0 0.0
        %544 = vmatprep.subr.mxu0 0.0
        %545 = vmatpush1.msra.mxu0 0.0
        %546 = vmatprep.subr.mxu0 0.0
        %547 = vmatpush1.msra.mxu0 0.0
        %548 = vmatprep.subr.mxu0 0.0
        %549 = vmatpush1.msra.mxu0 0.0
        %550 = vmatprep.subr.mxu0 0.0
        %551 = vmatpush1.msra.mxu0 %v515
        %552 = vmatprep.subr.mxu0 0.0
        %553 = vmatpush2.msra.mxu0 0.0
        %554 = vmatprep.subr.mxu0 0.0
        %555 = vmatpush2.msra.mxu0 0.0
        %556 = vmatprep.subr.mxu0 0.0
        %557 = vmatpush2.msra.mxu0 0.0
        %558 = vmatprep.subr.mxu0 0.0
        %559 = vmatpush2.msra.mxu0 0.0
        %560 = vmatprep.subr.mxu0 0.0
        %561 = vmatpush2.msra.mxu0 0.0
        %562 = vmatprep.subr.mxu0 0.0
        %563 = vmatpush2.msra.mxu0 0.0
        %564 = vmatprep.subr.mxu0 0.0
        %565 = vmatpush2.msra.mxu0 0.0
        %566 = vmatprep.subr.mxu0 0.0
        %567 = vmatpush2.msra.mxu0 0.0
        %568 = vmatprep.subr.mxu0 0.0
        %569 = vmatpush2.msra.mxu0 0.0
        %570 = vmatprep.subr.mxu0 0.0
        %571 = vmatpush2.msra.mxu0 0.0
        %572 = vmatprep.subr.mxu0 0.0
        %573 = vmatpush2.msra.mxu0 0.0
        %574 = vmatprep.subr.mxu0 0.0
        %575 = vmatpush2.msra.mxu0 0.0
        %576 = vmatprep.subr.mxu0 0.0
        %577 = vmatpush2.msra.mxu0 0.0
        %578 = vmatprep.subr.mxu0 0.0
        %579 = vmatpush2.msra.mxu0 0.0
        %580 = vmatprep.subr.mxu0 0.0
        %581 = vmatpush2.msra.mxu0 0.0
        %582 = vmatprep.subr.mxu0 0.0
        %583 = vmatpush2.msra.mxu0 0.0
        %584 = vmatprep.mubr.f32.mxu0 0.0
        %585 = vmatmul.mubr.f32.gmra.mxu0 %v518
        %v586 = vpop.f32.mrf.mxu0
        %v587 = vadd.f32 0.0, %v586
        %v588 = vpop.f32.mrf.mxu0
        %589 = vdwg.mxu0
        %v590 = vld [vmem:[#allocation8] sm:$0xff]
        %591 = vrot.lane.b32.xlu0 %v413, 120
        %v592 = vpop.permute.xlu0 %591
        %593 = vrot.lane.b32.xlu0 %v413, 88
        %v594 = vpop.permute.xlu0 %593
        %v595 = vsel %vm426, %v592, 0
        %v597 = vsel %vm426, %v594, 0
        %599 = vmatprep.subr.mxu0 0.0
        %600 = vmatpush1.xpose.msra.mxu0 0.0
        %601 = vmatprep.subr.mxu0 0.0
        %602 = vmatpush1.xpose.msra.mxu0 0.0
        %603 = vmatprep.subr.mxu0 0.0
        %604 = vmatpush1.xpose.msra.mxu0 0.0
        %605 = vmatprep.subr.mxu0 0.0
        %606 = vmatpush1.xpose.msra.mxu0 0.0
        %607 = vmatprep.subr.mxu0 0.0
        %608 = vmatpush1.xpose.msra.mxu0 0.0
        %609 = vmatprep.subr.mxu0 0.0
        %610 = vmatpush1.xpose.msra.mxu0 0.0
        %611 = vmatprep.subr.mxu0 0.0
        %612 = vmatpush1.xpose.msra.mxu0 0.0
        %613 = vmatprep.subr.mxu0 0.0
        %614 = vmatpush1.xpose.msra.mxu0 0.0
        %615 = vmatprep.subr.mxu0 0.0
        %616 = vmatpush1.xpose.msra.mxu0 0.0
        %617 = vmatprep.subr.mxu0 0.0
        %618 = vmatpush1.xpose.msra.mxu0 0.0
        %619 = vmatprep.subr.mxu0 0.0
        %620 = vmatpush1.xpose.msra.mxu0 0.0
        %621 = vmatprep.subr.mxu0 0.0
        %622 = vmatpush1.xpose.msra.mxu0 0.0
        %623 = vmatprep.subr.mxu0 0.0
        %624 = vmatpush1.xpose.msra.mxu0 0.0
        %625 = vmatprep.subr.mxu0 0.0
        %626 = vmatpush1.xpose.msra.mxu0 0.0
        %627 = vmatprep.subr.mxu0 0.0
        %628 = vmatpush1.xpose.msra.mxu0 0.0
        %629 = vmatprep.subr.mxu0 0.0
        %630 = vmatpush1.xpose.msra.mxu0 %v597
        %631 = vmatprep.subr.mxu0 0.0
        %632 = vmatpush2.xpose.msra.mxu0 0.0
        %633 = vmatprep.subr.mxu0 0.0
        %634 = vmatpush2.xpose.msra.mxu0 0.0
        %635 = vmatprep.subr.mxu0 0.0
        %636 = vmatpush2.xpose.msra.mxu0 0.0
        %637 = vmatprep.subr.mxu0 0.0
        %638 = vmatpush2.xpose.msra.mxu0 0.0
        %639 = vmatprep.subr.mxu0 0.0
        %640 = vmatpush2.xpose.msra.mxu0 0.0
        %641 = vmatprep.subr.mxu0 0.0
        %642 = vmatpush2.xpose.msra.mxu0 0.0
        %643 = vmatprep.subr.mxu0 0.0
        %644 = vmatpush2.xpose.msra.mxu0 0.0
        %645 = vmatprep.subr.mxu0 0.0
        %646 = vmatpush2.xpose.msra.mxu0 0.0
        %647 = vmatprep.subr.mxu0 0.0
        %648 = vmatpush2.xpose.msra.mxu0 0.0
        %649 = vmatprep.subr.mxu0 0.0
        %650 = vmatpush2.xpose.msra.mxu0 0.0
        %651 = vmatprep.subr.mxu0 0.0
        %652 = vmatpush2.xpose.msra.mxu0 0.0
        %653 = vmatprep.subr.mxu0 0.0
        %654 = vmatpush2.xpose.msra.mxu0 0.0
        %655 = vmatprep.subr.mxu0 0.0
        %656 = vmatpush2.xpose.msra.mxu0 0.0
        %657 = vmatprep.subr.mxu0 0.0
        %658 = vmatpush2.xpose.msra.mxu0 0.0
        %659 = vmatprep.subr.mxu0 0.0
        %660 = vmatpush2.xpose.msra.mxu0 0.0
        %661 = vmatprep.subr.mxu0 0.0
        %662 = vmatpush2.xpose.msra.mxu0 0.0
        %663 = vmatprep.mubr.f32.mxu0 0.0
        %664 = vmatmul.mubr.f32.gmra.mxu0 %v595
        %v665 = vpop.f32.mrf.mxu0
        %v666 = vadd.f32 0.0, %v665
        %v667 = vpop.f32.mrf.mxu0
        %668 = vdwg.mxu0
        %v669 = vmul.f32 %v666, 0.35355338
        %v670 = vadd.f32 %v669, %v421
        %v671 = vsel %vm426, %v670, -inf
        %672 = vmax.xlane.f32.xlu0 %v671
        %v673 = vpop.xlane.xlu0 %672
        %v674 = vsub.f32 %v670, %v673
        %v675 = vmul.f32 %v674, 1.442695
        %v676 = vpow.pop %v675
        %v677 = vsel %vm426, %v676, 0.0
        %678 = vadd.xlane.f32.xlu0 %v677
        %v679 = vpop.xlane.xlu0 %678
        %v680 = vrcp.pop %v679
        %v681 = vmul.f32 %v676, %v680
        %682 = vrot.lane.b32.xlu0 %v413, 56
        %v683 = vpop.permute.xlu0 %682
        %v686 = vsel %vm426, %v681, 0
        %688 = vmatprep.subr.mxu0 0.0
        %689 = vmatpush1.msra.mxu0 0.0
        %690 = vmatprep.subr.mxu0 0.0
        %691 = vmatpush1.msra.mxu0 0.0
        %692 = vmatprep.subr.mxu0 0.0
        %693 = vmatpush1.msra.mxu0 0.0
        %694 = vmatprep.subr.mxu0 0.0
        %695 = vmatpush1.msra.mxu0 0.0
        %696 = vmatprep.subr.mxu0 0.0
        %697 = vmatpush1.msra.mxu0 0.0
        %698 = vmatprep.subr.mxu0 0.0
        %699 = vmatpush1.msra.mxu0 0.0
        %700 = vmatprep.subr.mxu0 0.0
        %701 = vmatpush1.msra.mxu0 0.0
        %702 = vmatprep.subr.mxu0 0.0
        %703 = vmatpush1.msra.mxu0 0.0
        %704 = vmatprep.subr.mxu0 0.0
        %705 = vmatpush1.msra.mxu0 0.0
        %706 = vmatprep.subr.mxu0 0.0
        %707 = vmatpush1.msra.mxu0 0.0
        %708 = vmatprep.subr.mxu0 0.0
        %709 = vmatpush1.msra.mxu0 0.0
        %710 = vmatprep.subr.mxu0 0.0
        %711 = vmatpush1.msra.mxu0 0.0
        %712 = vmatprep.subr.mxu0 0.0
        %713 = vmatpush1.msra.mxu0 0.0
        %714 = vmatprep.subr.mxu0 0.0
        %715 = vmatpush1.msra.mxu0 0.0
        %716 = vmatprep.subr.mxu0 0.0
        %717 = vmatpush1.msra.mxu0 0.0
        %718 = vmatprep.subr.mxu0 0.0
        %719 = vmatpush1.msra.mxu0 %v683
        %720 = vmatprep.subr.mxu0 0.0
        %721 = vmatpush2.msra.mxu0 0.0
        %722 = vmatprep.subr.mxu0 0.0
        %723 = vmatpush2.msra.mxu0 0.0
        %724 = vmatprep.subr.mxu0 0.0
        %725 = vmatpush2.msra.mxu0 0.0
        %726 = vmatprep.subr.mxu0 0.0
        %727 = vmatpush2.msra.mxu0 0.0
        %728 = vmatprep.subr.mxu0 0.0
        %729 = vmatpush2.msra.mxu0 0.0
        %730 = vmatprep.subr.mxu0 0.0
        %731 = vmatpush2.msra.mxu0 0.0
        %732 = vmatprep.subr.mxu0 0.0
        %733 = vmatpush2.msra.mxu0 0.0
        %734 = vmatprep.subr.mxu0 0.0
        %735 = vmatpush2.msra.mxu0 0.0
        %736 = vmatprep.subr.mxu0 0.0
        %737 = vmatpush2.msra.mxu0 0.0
        %738 = vmatprep.subr.mxu0 0.0
        %739 = vmatpush2.msra.mxu0 0.0
        %740 = vmatprep.subr.mxu0 0.0
        %741 = vmatpush2.msra.mxu0 0.0
        %742 = vmatprep.subr.mxu0 0.0
        %743 = vmatpush2.msra.mxu0 0.0
        %744 = vmatprep.subr.mxu0 0.0
        %745 = vmatpush2.msra.mxu0 0.0
        %746 = vmatprep.subr.mxu0 0.0
        %747 = vmatpush2.msra.mxu0 0.0
        %748 = vmatprep.subr.mxu0 0.0
        %749 = vmatpush2.msra.mxu0 0.0
        %750 = vmatprep.subr.mxu0 0.0
        %751 = vmatpush2.msra.mxu0 0.0
        %752 = vmatprep.mubr.f32.mxu0 0.0
        %753 = vmatmul.mubr.f32.gmra.mxu0 %v686
        %v754 = vpop.f32.mrf.mxu0
        %v755 = vadd.f32 0.0, %v754
        %v756 = vpop.f32.mrf.mxu0
        %757 = vdwg.mxu0
        %v758 = vld [vmem:[#allocation8 + $0x8] sm:$0xff]
        %v760 = vsel %vm426, %v755, 0
        %762 = vmatprep.subr.mxu0 0.0
        %763 = vmatpush1.msra.mxu0 0.0
        %764 = vmatprep.subr.mxu0 0.0
        %765 = vmatpush1.msra.mxu0 0.0
        %766 = vmatprep.subr.mxu0 0.0
        %767 = vmatpush1.msra.mxu0 0.0
        %768 = vmatprep.subr.mxu0 0.0
        %769 = vmatpush1.msra.mxu0 0.0
        %770 = vmatprep.subr.mxu0 0.0
        %771 = vmatpush1.msra.mxu0 0.0
        %772 = vmatprep.subr.mxu0 0.0
        %773 = vmatpush1.msra.mxu0 0.0
        %774 = vmatprep.subr.mxu0 0.0
        %775 = vmatpush1.msra.mxu0 0.0
        %776 = vmatprep.subr.mxu0 0.0
        %777 = vmatpush1.msra.mxu0 0.0
        %778 = vmatprep.subr.mxu0 0.0
        %779 = vmatpush1.msra.mxu0 0.0
        %780 = vmatprep.subr.mxu0 0.0
        %781 = vmatpush1.msra.mxu0 0.0
        %782 = vmatprep.subr.mxu0 0.0
        %783 = vmatpush1.msra.mxu0 0.0
        %784 = vmatprep.subr.mxu0 0.0
        %785 = vmatpush1.msra.mxu0 0.0
        %786 = vmatprep.subr.mxu0 0.0
        %787 = vmatpush1.msra.mxu0 0.0
        %788 = vmatprep.subr.mxu0 0.0
        %789 = vmatpush1.msra.mxu0 0.0
        %790 = vmatprep.subr.mxu0 0.0
        %791 = vmatpush1.msra.mxu0 0.0
        %792 = vmatprep.subr.mxu0 0.0
        %793 = vmatpush1.msra.mxu0 %v758
        %794 = vmatprep.subr.mxu0 0.0
        %795 = vmatpush2.msra.mxu0 0.0
        %796 = vmatprep.subr.mxu0 0.0
        %797 = vmatpush2.msra.mxu0 0.0
        %798 = vmatprep.subr.mxu0 0.0
        %799 = vmatpush2.msra.mxu0 0.0
        %800 = vmatprep.subr.mxu0 0.0
        %801 = vmatpush2.msra.mxu0 0.0
        %802 = vmatprep.subr.mxu0 0.0
        %803 = vmatpush2.msra.mxu0 0.0
        %804 = vmatprep.subr.mxu0 0.0
        %805 = vmatpush2.msra.mxu0 0.0
        %806 = vmatprep.subr.mxu0 0.0
        %807 = vmatpush2.msra.mxu0 0.0
        %808 = vmatprep.subr.mxu0 0.0
        %809 = vmatpush2.msra.mxu0 0.0
        %810 = vmatprep.subr.mxu0 0.0
        %811 = vmatpush2.msra.mxu0 0.0
        %812 = vmatprep.subr.mxu0 0.0
        %813 = vmatpush2.msra.mxu0 0.0
        %814 = vmatprep.subr.mxu0 0.0
        %815 = vmatpush2.msra.mxu0 0.0
        %816 = vmatprep.subr.mxu0 0.0
        %817 = vmatpush2.msra.mxu0 0.0
        %818 = vmatprep.subr.mxu0 0.0
        %819 = vmatpush2.msra.mxu0 0.0
        %820 = vmatprep.subr.mxu0 0.0
        %821 = vmatpush2.msra.mxu0 0.0
        %822 = vmatprep.subr.mxu0 0.0
        %823 = vmatpush2.msra.mxu0 0.0
        %824 = vmatprep.subr.mxu0 0.0
        %825 = vmatpush2.msra.mxu0 0.0
        %826 = vmatprep.mubr.f32.mxu0 0.0
        %827 = vmatmul.mubr.f32.gmra.mxu0 %v760
        %v828 = vpop.f32.mrf.mxu0
        %v829 = vadd.f32 0.0, %v828
        %v830 = vpop.f32.mrf.mxu0
        %831 = vdwg.mxu0
        %v833 = vsel %vm426, %v587, 0
        %835 = vmatprep.subr.mxu0 0.0
        %836 = vmatpush1.msra.mxu0 0.0
        %837 = vmatprep.subr.mxu0 0.0
        %838 = vmatpush1.msra.mxu0 0.0
        %839 = vmatprep.subr.mxu0 0.0
        %840 = vmatpush1.msra.mxu0 0.0
        %841 = vmatprep.subr.mxu0 0.0
        %842 = vmatpush1.msra.mxu0 0.0
        %843 = vmatprep.subr.mxu0 0.0
        %844 = vmatpush1.msra.mxu0 0.0
        %845 = vmatprep.subr.mxu0 0.0
        %846 = vmatpush1.msra.mxu0 0.0
        %847 = vmatprep.subr.mxu0 0.0
        %848 = vmatpush1.msra.mxu0 0.0
        %849 = vmatprep.subr.mxu0 0.0
        %850 = vmatpush1.msra.mxu0 0.0
        %851 = vmatprep.subr.mxu0 0.0
        %852 = vmatpush1.msra.mxu0 0.0
        %853 = vmatprep.subr.mxu0 0.0
        %854 = vmatpush1.msra.mxu0 0.0
        %855 = vmatprep.subr.mxu0 0.0
        %856 = vmatpush1.msra.mxu0 0.0
        %857 = vmatprep.subr.mxu0 0.0
        %858 = vmatpush1.msra.mxu0 0.0
        %859 = vmatprep.subr.mxu0 0.0
        %860 = vmatpush1.msra.mxu0 0.0
        %861 = vmatprep.subr.mxu0 0.0
        %862 = vmatpush1.msra.mxu0 0.0
        %863 = vmatprep.subr.mxu0 0.0
        %864 = vmatpush1.msra.mxu0 0.0
        %865 = vmatprep.subr.mxu0 0.0
        %866 = vmatpush1.msra.mxu0 %v590
        %867 = vmatprep.subr.mxu0 0.0
        %868 = vmatpush2.msra.mxu0 0.0
        %869 = vmatprep.subr.mxu0 0.0
        %870 = vmatpush2.msra.mxu0 0.0
        %871 = vmatprep.subr.mxu0 0.0
        %872 = vmatpush2.msra.mxu0 0.0
        %873 = vmatprep.subr.mxu0 0.0
        %874 = vmatpush2.msra.mxu0 0.0
        %875 = vmatprep.subr.mxu0 0.0
        %876 = vmatpush2.msra.mxu0 0.0
        %877 = vmatprep.subr.mxu0 0.0
        %878 = vmatpush2.msra.mxu0 0.0
        %879 = vmatprep.subr.mxu0 0.0
        %880 = vmatpush2.msra.mxu0 0.0
        %881 = vmatprep.subr.mxu0 0.0
        %882 = vmatpush2.msra.mxu0 0.0
        %883 = vmatprep.subr.mxu0 0.0
        %884 = vmatpush2.msra.mxu0 0.0
        %885 = vmatprep.subr.mxu0 0.0
        %886 = vmatpush2.msra.mxu0 0.0
        %887 = vmatprep.subr.mxu0 0.0
        %888 = vmatpush2.msra.mxu0 0.0
        %889 = vmatprep.subr.mxu0 0.0
        %890 = vmatpush2.msra.mxu0 0.0
        %891 = vmatprep.subr.mxu0 0.0
        %892 = vmatpush2.msra.mxu0 0.0
        %893 = vmatprep.subr.mxu0 0.0
        %894 = vmatpush2.msra.mxu0 0.0
        %895 = vmatprep.subr.mxu0 0.0
        %896 = vmatpush2.msra.mxu0 0.0
        %897 = vmatprep.subr.mxu0 0.0
        %898 = vmatpush2.msra.mxu0 0.0
        %899 = vmatprep.mubr.f32.mxu0 0.0
        %900 = vmatmul.mubr.f32.gmra.mxu0 %v833
        %v901 = vpop.f32.mrf.mxu0
        %v902 = vadd.f32 %v829, %v901
        %v903 = vpop.f32.mrf.mxu0
        %904 = vdwg.mxu0
        %905 = vrot.lane.b32.xlu0 %v413, 112
        %v906 = vpop.permute.xlu0 %905
        %907 = vrot.lane.b32.xlu0 %v413, 80
        %v908 = vpop.permute.xlu0 %907
        %v909 = vsel %vm426, %v906, 0
        %v911 = vsel %vm426, %v908, 0
        %913 = vmatprep.subr.mxu0 0.0
        %914 = vmatpush1.xpose.msra.mxu0 0.0
        %915 = vmatprep.subr.mxu0 0.0
        %916 = vmatpush1.xpose.msra.mxu0 0.0
        %917 = vmatprep.subr.mxu0 0.0
        %918 = vmatpush1.xpose.msra.mxu0 0.0
        %919 = vmatprep.subr.mxu0 0.0
        %920 = vmatpush1.xpose.msra.mxu0 0.0
        %921 = vmatprep.subr.mxu0 0.0
        %922 = vmatpush1.xpose.msra.mxu0 0.0
        %923 = vmatprep.subr.mxu0 0.0
        %924 = vmatpush1.xpose.msra.mxu0 0.0
        %925 = vmatprep.subr.mxu0 0.0
        %926 = vmatpush1.xpose.msra.mxu0 0.0
        %927 = vmatprep.subr.mxu0 0.0
        %928 = vmatpush1.xpose.msra.mxu0 0.0
        %929 = vmatprep.subr.mxu0 0.0
        %930 = vmatpush1.xpose.msra.mxu0 0.0
        %931 = vmatprep.subr.mxu0 0.0
        %932 = vmatpush1.xpose.msra.mxu0 0.0
        %933 = vmatprep.subr.mxu0 0.0
        %934 = vmatpush1.xpose.msra.mxu0 0.0
        %935 = vmatprep.subr.mxu0 0.0
        %936 = vmatpush1.xpose.msra.mxu0 0.0
        %937 = vmatprep.subr.mxu0 0.0
        %938 = vmatpush1.xpose.msra.mxu0 0.0
        %939 = vmatprep.subr.mxu0 0.0
        %940 = vmatpush1.xpose.msra.mxu0 0.0
        %941 = vmatprep.subr.mxu0 0.0
        %942 = vmatpush1.xpose.msra.mxu0 0.0
        %943 = vmatprep.subr.mxu0 0.0
        %944 = vmatpush1.xpose.msra.mxu0 %v911
        %945 = vmatprep.subr.mxu0 0.0
        %946 = vmatpush2.xpose.msra.mxu0 0.0
        %947 = vmatprep.subr.mxu0 0.0
        %948 = vmatpush2.xpose.msra.mxu0 0.0
        %949 = vmatprep.subr.mxu0 0.0
        %950 = vmatpush2.xpose.msra.mxu0 0.0
        %951 = vmatprep.subr.mxu0 0.0
        %952 = vmatpush2.xpose.msra.mxu0 0.0
        %953 = vmatprep.subr.mxu0 0.0
        %954 = vmatpush2.xpose.msra.mxu0 0.0
        %955 = vmatprep.subr.mxu0 0.0
        %956 = vmatpush2.xpose.msra.mxu0 0.0
        %957 = vmatprep.subr.mxu0 0.0
        %958 = vmatpush2.xpose.msra.mxu0 0.0
        %959 = vmatprep.subr.mxu0 0.0
        %960 = vmatpush2.xpose.msra.mxu0 0.0
        %961 = vmatprep.subr.mxu0 0.0
        %962 = vmatpush2.xpose.msra.mxu0 0.0
        %963 = vmatprep.subr.mxu0 0.0
        %964 = vmatpush2.xpose.msra.mxu0 0.0
        %965 = vmatprep.subr.mxu0 0.0
        %966 = vmatpush2.xpose.msra.mxu0 0.0
        %967 = vmatprep.subr.mxu0 0.0
        %968 = vmatpush2.xpose.msra.mxu0 0.0
        %969 = vmatprep.subr.mxu0 0.0
        %970 = vmatpush2.xpose.msra.mxu0 0.0
        %971 = vmatprep.subr.mxu0 0.0
        %972 = vmatpush2.xpose.msra.mxu0 0.0
        %973 = vmatprep.subr.mxu0 0.0
        %974 = vmatpush2.xpose.msra.mxu0 0.0
        %975 = vmatprep.subr.mxu0 0.0
        %976 = vmatpush2.xpose.msra.mxu0 0.0
        %977 = vmatprep.mubr.f32.mxu0 0.0
        %978 = vmatmul.mubr.f32.gmra.mxu0 %v909
        %v979 = vpop.f32.mrf.mxu0
        %v980 = vadd.f32 0.0, %v979
        %v981 = vpop.f32.mrf.mxu0
        %982 = vdwg.mxu0
        %v983 = vmul.f32 %v980, 0.35355338
        %v984 = vadd.f32 %v983, %v421
        %v985 = vsel %vm426, %v984, -inf
        %986 = vmax.xlane.f32.xlu0 %v985
        %v987 = vpop.xlane.xlu0 %986
        %v988 = vsub.f32 %v984, %v987
        %v989 = vmul.f32 %v988, 1.442695
        %v990 = vpow.pop %v989
        %v991 = vsel %vm426, %v990, 0.0
        %992 = vadd.xlane.f32.xlu0 %v991
        %v993 = vpop.xlane.xlu0 %992
        %v994 = vrcp.pop %v993
        %v995 = vmul.f32 %v990, %v994
        %996 = vrot.lane.b32.xlu0 %v413, 48
        %v997 = vpop.permute.xlu0 %996
        %v1000 = vsel %vm426, %v995, 0
        %1002 = vmatprep.subr.mxu0 0.0
        %1003 = vmatpush1.msra.mxu0 0.0
        %1004 = vmatprep.subr.mxu0 0.0
        %1005 = vmatpush1.msra.mxu0 0.0
        %1006 = vmatprep.subr.mxu0 0.0
        %1007 = vmatpush1.msra.mxu0 0.0
        %1008 = vmatprep.subr.mxu0 0.0
        %1009 = vmatpush1.msra.mxu0 0.0
        %1010 = vmatprep.subr.mxu0 0.0
        %1011 = vmatpush1.msra.mxu0 0.0
        %1012 = vmatprep.subr.mxu0 0.0
        %1013 = vmatpush1.msra.mxu0 0.0
        %1014 = vmatprep.subr.mxu0 0.0
        %1015 = vmatpush1.msra.mxu0 0.0
        %1016 = vmatprep.subr.mxu0 0.0
        %1017 = vmatpush1.msra.mxu0 0.0
        %1018 = vmatprep.subr.mxu0 0.0
        %1019 = vmatpush1.msra.mxu0 0.0
        %1020 = vmatprep.subr.mxu0 0.0
        %1021 = vmatpush1.msra.mxu0 0.0
        %1022 = vmatprep.subr.mxu0 0.0
        %1023 = vmatpush1.msra.mxu0 0.0
        %1024 = vmatprep.subr.mxu0 0.0
        %1025 = vmatpush1.msra.mxu0 0.0
        %1026 = vmatprep.subr.mxu0 0.0
        %1027 = vmatpush1.msra.mxu0 0.0
        %1028 = vmatprep.subr.mxu0 0.0
        %1029 = vmatpush1.msra.mxu0 0.0
        %1030 = vmatprep.subr.mxu0 0.0
        %1031 = vmatpush1.msra.mxu0 0.0
        %1032 = vmatprep.subr.mxu0 0.0
        %1033 = vmatpush1.msra.mxu0 %v997
        %1034 = vmatprep.subr.mxu0 0.0
        %1035 = vmatpush2.msra.mxu0 0.0
        %1036 = vmatprep.subr.mxu0 0.0
        %1037 = vmatpush2.msra.mxu0 0.0
        %1038 = vmatprep.subr.mxu0 0.0
        %1039 = vmatpush2.msra.mxu0 0.0
        %1040 = vmatprep.subr.mxu0 0.0
        %1041 = vmatpush2.msra.mxu0 0.0
        %1042 = vmatprep.subr.mxu0 0.0
        %1043 = vmatpush2.msra.mxu0 0.0
        %1044 = vmatprep.subr.mxu0 0.0
        %1045 = vmatpush2.msra.mxu0 0.0
        %1046 = vmatprep.subr.mxu0 0.0
        %1047 = vmatpush2.msra.mxu0 0.0
        %1048 = vmatprep.subr.mxu0 0.0
        %1049 = vmatpush2.msra.mxu0 0.0
        %1050 = vmatprep.subr.mxu0 0.0
        %1051 = vmatpush2.msra.mxu0 0.0
        %1052 = vmatprep.subr.mxu0 0.0
        %1053 = vmatpush2.msra.mxu0 0.0
        %1054 = vmatprep.subr.mxu0 0.0
        %1055 = vmatpush2.msra.mxu0 0.0
        %1056 = vmatprep.subr.mxu0 0.0
        %1057 = vmatpush2.msra.mxu0 0.0
        %1058 = vmatprep.subr.mxu0 0.0
        %1059 = vmatpush2.msra.mxu0 0.0
        %1060 = vmatprep.subr.mxu0 0.0
        %1061 = vmatpush2.msra.mxu0 0.0
        %1062 = vmatprep.subr.mxu0 0.0
        %1063 = vmatpush2.msra.mxu0 0.0
        %1064 = vmatprep.subr.mxu0 0.0
        %1065 = vmatpush2.msra.mxu0 0.0
        %1066 = vmatprep.mubr.f32.mxu0 0.0
        %1067 = vmatmul.mubr.f32.gmra.mxu0 %v1000
        %v1068 = vpop.f32.mrf.mxu0
        %v1069 = vadd.f32 0.0, %v1068
        %v1070 = vpop.f32.mrf.mxu0
        %1071 = vdwg.mxu0
        %v1072 = vld [vmem:[#allocation8 + $0x10] sm:$0xff]
        %v1074 = vsel %vm426, %v1069, 0
        %1076 = vmatprep.subr.mxu0 0.0
        %1077 = vmatpush1.msra.mxu0 0.0
        %1078 = vmatprep.subr.mxu0 0.0
        %1079 = vmatpush1.msra.mxu0 0.0
        %1080 = vmatprep.subr.mxu0 0.0
        %1081 = vmatpush1.msra.mxu0 0.0
        %1082 = vmatprep.subr.mxu0 0.0
        %1083 = vmatpush1.msra.mxu0 0.0
        %1084 = vmatprep.subr.mxu0 0.0
        %1085 = vmatpush1.msra.mxu0 0.0
        %1086 = vmatprep.subr.mxu0 0.0
        %1087 = vmatpush1.msra.mxu0 0.0
        %1088 = vmatprep.subr.mxu0 0.0
        %1089 = vmatpush1.msra.mxu0 0.0
        %1090 = vmatprep.subr.mxu0 0.0
        %1091 = vmatpush1.msra.mxu0 0.0
        %1092 = vmatprep.subr.mxu0 0.0
        %1093 = vmatpush1.msra.mxu0 0.0
        %1094 = vmatprep.subr.mxu0 0.0
        %1095 = vmatpush1.msra.mxu0 0.0
        %1096 = vmatprep.subr.mxu0 0.0
        %1097 = vmatpush1.msra.mxu0 0.0
        %1098 = vmatprep.subr.mxu0 0.0
        %1099 = vmatpush1.msra.mxu0 0.0
        %1100 = vmatprep.subr.mxu0 0.0
        %1101 = vmatpush1.msra.mxu0 0.0
        %1102 = vmatprep.subr.mxu0 0.0
        %1103 = vmatpush1.msra.mxu0 0.0
        %1104 = vmatprep.subr.mxu0 0.0
        %1105 = vmatpush1.msra.mxu0 0.0
        %1106 = vmatprep.subr.mxu0 0.0
        %1107 = vmatpush1.msra.mxu0 %v1072
        %1108 = vmatprep.subr.mxu0 0.0
        %1109 = vmatpush2.msra.mxu0 0.0
        %1110 = vmatprep.subr.mxu0 0.0
        %1111 = vmatpush2.msra.mxu0 0.0
        %1112 = vmatprep.subr.mxu0 0.0
        %1113 = vmatpush2.msra.mxu0 0.0
        %1114 = vmatprep.subr.mxu0 0.0
        %1115 = vmatpush2.msra.mxu0 0.0
        %1116 = vmatprep.subr.mxu0 0.0
        %1117 = vmatpush2.msra.mxu0 0.0
        %1118 = vmatprep.subr.mxu0 0.0
        %1119 = vmatpush2.msra.mxu0 0.0
        %1120 = vmatprep.subr.mxu0 0.0
        %1121 = vmatpush2.msra.mxu0 0.0
        %1122 = vmatprep.subr.mxu0 0.0
        %1123 = vmatpush2.msra.mxu0 0.0
        %1124 = vmatprep.subr.mxu0 0.0
        %1125 = vmatpush2.msra.mxu0 0.0
        %1126 = vmatprep.subr.mxu0 0.0
        %1127 = vmatpush2.msra.mxu0 0.0
        %1128 = vmatprep.subr.mxu0 0.0
        %1129 = vmatpush2.msra.mxu0 0.0
        %1130 = vmatprep.subr.mxu0 0.0
        %1131 = vmatpush2.msra.mxu0 0.0
        %1132 = vmatprep.subr.mxu0 0.0
        %1133 = vmatpush2.msra.mxu0 0.0
        %1134 = vmatprep.subr.mxu0 0.0
        %1135 = vmatpush2.msra.mxu0 0.0
        %1136 = vmatprep.subr.mxu0 0.0
        %1137 = vmatpush2.msra.mxu0 0.0
        %1138 = vmatprep.subr.mxu0 0.0
        %1139 = vmatpush2.msra.mxu0 0.0
        %1140 = vmatprep.mubr.f32.mxu0 0.0
        %1141 = vmatmul.mubr.f32.gmra.mxu0 %v1074
        %v1142 = vpop.f32.mrf.mxu0
        %v1143 = vadd.f32 0.0, %v1142
        %v1144 = vpop.f32.mrf.mxu0
        %1145 = vdwg.mxu0
        %v1146 = vadd.f32 %v902, %v1143
        %1147 = vrot.lane.b32.xlu0 %v413, 104
        %v1148 = vpop.permute.xlu0 %1147
        %1149 = vrot.lane.b32.xlu0 %v413, 72
        %v1150 = vpop.permute.xlu0 %1149
        %v1151 = vsel %vm426, %v1148, 0
        %v1153 = vsel %vm426, %v1150, 0
        %1155 = vmatprep.subr.mxu0 0.0
        %1156 = vmatpush1.xpose.msra.mxu0 0.0
        %1157 = vmatprep.subr.mxu0 0.0
        %1158 = vmatpush1.xpose.msra.mxu0 0.0
        %1159 = vmatprep.subr.mxu0 0.0
        %1160 = vmatpush1.xpose.msra.mxu0 0.0
        %1161 = vmatprep.subr.mxu0 0.0
        %1162 = vmatpush1.xpose.msra.mxu0 0.0
        %1163 = vmatprep.subr.mxu0 0.0
        %1164 = vmatpush1.xpose.msra.mxu0 0.0
        %1165 = vmatprep.subr.mxu0 0.0
        %1166 = vmatpush1.xpose.msra.mxu0 0.0
        %1167 = vmatprep.subr.mxu0 0.0
        %1168 = vmatpush1.xpose.msra.mxu0 0.0
        %1169 = vmatprep.subr.mxu0 0.0
        %1170 = vmatpush1.xpose.msra.mxu0 0.0
        %1171 = vmatprep.subr.mxu0 0.0
        %1172 = vmatpush1.xpose.msra.mxu0 0.0
        %1173 = vmatprep.subr.mxu0 0.0
        %1174 = vmatpush1.xpose.msra.mxu0 0.0
        %1175 = vmatprep.subr.mxu0 0.0
        %1176 = vmatpush1.xpose.msra.mxu0 0.0
        %1177 = vmatprep.subr.mxu0 0.0
        %1178 = vmatpush1.xpose.msra.mxu0 0.0
        %1179 = vmatprep.subr.mxu0 0.0
        %1180 = vmatpush1.xpose.msra.mxu0 0.0
        %1181 = vmatprep.subr.mxu0 0.0
        %1182 = vmatpush1.xpose.msra.mxu0 0.0
        %1183 = vmatprep.subr.mxu0 0.0
        %1184 = vmatpush1.xpose.msra.mxu0 0.0
        %1185 = vmatprep.subr.mxu0 0.0
        %1186 = vmatpush1.xpose.msra.mxu0 %v1153
        %1187 = vmatprep.subr.mxu0 0.0
        %1188 = vmatpush2.xpose.msra.mxu0 0.0
        %1189 = vmatprep.subr.mxu0 0.0
        %1190 = vmatpush2.xpose.msra.mxu0 0.0
        %1191 = vmatprep.subr.mxu0 0.0
        %1192 = vmatpush2.xpose.msra.mxu0 0.0
        %1193 = vmatprep.subr.mxu0 0.0
        %1194 = vmatpush2.xpose.msra.mxu0 0.0
        %1195 = vmatprep.subr.mxu0 0.0
        %1196 = vmatpush2.xpose.msra.mxu0 0.0
        %1197 = vmatprep.subr.mxu0 0.0
        %1198 = vmatpush2.xpose.msra.mxu0 0.0
        %1199 = vmatprep.subr.mxu0 0.0
        %1200 = vmatpush2.xpose.msra.mxu0 0.0
        %1201 = vmatprep.subr.mxu0 0.0
        %1202 = vmatpush2.xpose.msra.mxu0 0.0
        %1203 = vmatprep.subr.mxu0 0.0
        %1204 = vmatpush2.xpose.msra.mxu0 0.0
        %1205 = vmatprep.subr.mxu0 0.0
        %1206 = vmatpush2.xpose.msra.mxu0 0.0
        %1207 = vmatprep.subr.mxu0 0.0
        %1208 = vmatpush2.xpose.msra.mxu0 0.0
        %1209 = vmatprep.subr.mxu0 0.0
        %1210 = vmatpush2.xpose.msra.mxu0 0.0
        %1211 = vmatprep.subr.mxu0 0.0
        %1212 = vmatpush2.xpose.msra.mxu0 0.0
        %1213 = vmatprep.subr.mxu0 0.0
        %1214 = vmatpush2.xpose.msra.mxu0 0.0
        %1215 = vmatprep.subr.mxu0 0.0
        %1216 = vmatpush2.xpose.msra.mxu0 0.0
        %1217 = vmatprep.subr.mxu0 0.0
        %1218 = vmatpush2.xpose.msra.mxu0 0.0
        %1219 = vmatprep.mubr.f32.mxu0 0.0
        %1220 = vmatmul.mubr.f32.gmra.mxu0 %v1151
        %v1221 = vpop.f32.mrf.mxu0
        %v1222 = vadd.f32 0.0, %v1221
        %v1223 = vpop.f32.mrf.mxu0
        %1224 = vdwg.mxu0
        %v1225 = vmul.f32 %v1222, 0.35355338
        %v1226 = vadd.f32 %v1225, %v421
        %v1227 = vsel %vm426, %v1226, -inf
        %1228 = vmax.xlane.f32.xlu0 %v1227
        %v1229 = vpop.xlane.xlu0 %1228
        %v1230 = vsub.f32 %v1226, %v1229
        %v1231 = vmul.f32 %v1230, 1.442695
        %v1232 = vpow.pop %v1231
        %v1233 = vsel %vm426, %v1232, 0.0
        %1234 = vadd.xlane.f32.xlu0 %v1233
        %v1235 = vpop.xlane.xlu0 %1234
        %v1236 = vrcp.pop %v1235
        %v1237 = vmul.f32 %v1232, %v1236
        %1238 = vrot.lane.b32.xlu0 %v413, 40
        %v1239 = vpop.permute.xlu0 %1238
        %v1242 = vsel %vm426, %v1237, 0
        %1244 = vmatprep.subr.mxu0 0.0
        %1245 = vmatpush1.msra.mxu0 0.0
        %1246 = vmatprep.subr.mxu0 0.0
        %1247 = vmatpush1.msra.mxu0 0.0
        %1248 = vmatprep.subr.mxu0 0.0
        %1249 = vmatpush1.msra.mxu0 0.0
        %1250 = vmatprep.subr.mxu0 0.0
        %1251 = vmatpush1.msra.mxu0 0.0
        %1252 = vmatprep.subr.mxu0 0.0
        %1253 = vmatpush1.msra.mxu0 0.0
        %1254 = vmatprep.subr.mxu0 0.0
        %1255 = vmatpush1.msra.mxu0 0.0
        %1256 = vmatprep.subr.mxu0 0.0
        %1257 = vmatpush1.msra.mxu0 0.0
        %1258 = vmatprep.subr.mxu0 0.0
        %1259 = vmatpush1.msra.mxu0 0.0
        %1260 = vmatprep.subr.mxu0 0.0
        %1261 = vmatpush1.msra.mxu0 0.0
        %1262 = vmatprep.subr.mxu0 0.0
        %1263 = vmatpush1.msra.mxu0 0.0
        %1264 = vmatprep.subr.mxu0 0.0
        %1265 = vmatpush1.msra.mxu0 0.0
        %1266 = vmatprep.subr.mxu0 0.0
        %1267 = vmatpush1.msra.mxu0 0.0
        %1268 = vmatprep.subr.mxu0 0.0
        %1269 = vmatpush1.msra.mxu0 0.0
        %1270 = vmatprep.subr.mxu0 0.0
        %1271 = vmatpush1.msra.mxu0 0.0
        %1272 = vmatprep.subr.mxu0 0.0
        %1273 = vmatpush1.msra.mxu0 0.0
        %1274 = vmatprep.subr.mxu0 0.0
        %1275 = vmatpush1.msra.mxu0 %v1239
        %1276 = vmatprep.subr.mxu0 0.0
        %1277 = vmatpush2.msra.mxu0 0.0
        %1278 = vmatprep.subr.mxu0 0.0
        %1279 = vmatpush2.msra.mxu0 0.0
        %1280 = vmatprep.subr.mxu0 0.0
        %1281 = vmatpush2.msra.mxu0 0.0
        %1282 = vmatprep.subr.mxu0 0.0
        %1283 = vmatpush2.msra.mxu0 0.0
        %1284 = vmatprep.subr.mxu0 0.0
        %1285 = vmatpush2.msra.mxu0 0.0
        %1286 = vmatprep.subr.mxu0 0.0
        %1287 = vmatpush2.msra.mxu0 0.0
        %1288 = vmatprep.subr.mxu0 0.0
        %1289 = vmatpush2.msra.mxu0 0.0
        %1290 = vmatprep.subr.mxu0 0.0
        %1291 = vmatpush2.msra.mxu0 0.0
        %1292 = vmatprep.subr.mxu0 0.0
        %1293 = vmatpush2.msra.mxu0 0.0
        %1294 = vmatprep.subr.mxu0 0.0
        %1295 = vmatpush2.msra.mxu0 0.0
        %1296 = vmatprep.subr.mxu0 0.0
        %1297 = vmatpush2.msra.mxu0 0.0
        %1298 = vmatprep.subr.mxu0 0.0
        %1299 = vmatpush2.msra.mxu0 0.0
        %1300 = vmatprep.subr.mxu0 0.0
        %1301 = vmatpush2.msra.mxu0 0.0
        %1302 = vmatprep.subr.mxu0 0.0
        %1303 = vmatpush2.msra.mxu0 0.0
        %1304 = vmatprep.subr.mxu0 0.0
        %1305 = vmatpush2.msra.mxu0 0.0
        %1306 = vmatprep.subr.mxu0 0.0
        %1307 = vmatpush2.msra.mxu0 0.0
        %1308 = vmatprep.mubr.f32.mxu0 0.0
        %1309 = vmatmul.mubr.f32.gmra.mxu0 %v1242
        %v1310 = vpop.f32.mrf.mxu0
        %v1311 = vadd.f32 0.0, %v1310
        %v1312 = vpop.f32.mrf.mxu0
        %1313 = vdwg.mxu0
        %v1314 = vld [vmem:[#allocation8 + $0x18] sm:$0xff]
        %v1316 = vsel %vm426, %v1311, 0
        %1318 = vmatprep.subr.mxu0 0.0
        %1319 = vmatpush1.msra.mxu0 0.0
        %1320 = vmatprep.subr.mxu0 0.0
        %1321 = vmatpush1.msra.mxu0 0.0
        %1322 = vmatprep.subr.mxu0 0.0
        %1323 = vmatpush1.msra.mxu0 0.0
        %1324 = vmatprep.subr.mxu0 0.0
        %1325 = vmatpush1.msra.mxu0 0.0
        %1326 = vmatprep.subr.mxu0 0.0
        %1327 = vmatpush1.msra.mxu0 0.0
        %1328 = vmatprep.subr.mxu0 0.0
        %1329 = vmatpush1.msra.mxu0 0.0
        %1330 = vmatprep.subr.mxu0 0.0
        %1331 = vmatpush1.msra.mxu0 0.0
        %1332 = vmatprep.subr.mxu0 0.0
        %1333 = vmatpush1.msra.mxu0 0.0
        %1334 = vmatprep.subr.mxu0 0.0
        %1335 = vmatpush1.msra.mxu0 0.0
        %1336 = vmatprep.subr.mxu0 0.0
        %1337 = vmatpush1.msra.mxu0 0.0
        %1338 = vmatprep.subr.mxu0 0.0
        %1339 = vmatpush1.msra.mxu0 0.0
        %1340 = vmatprep.subr.mxu0 0.0
        %1341 = vmatpush1.msra.mxu0 0.0
        %1342 = vmatprep.subr.mxu0 0.0
        %1343 = vmatpush1.msra.mxu0 0.0
        %1344 = vmatprep.subr.mxu0 0.0
        %1345 = vmatpush1.msra.mxu0 0.0
        %1346 = vmatprep.subr.mxu0 0.0
        %1347 = vmatpush1.msra.mxu0 0.0
        %1348 = vmatprep.subr.mxu0 0.0
        %1349 = vmatpush1.msra.mxu0 %v1314
        %1350 = vmatprep.subr.mxu0 0.0
        %1351 = vmatpush2.msra.mxu0 0.0
        %1352 = vmatprep.subr.mxu0 0.0
        %1353 = vmatpush2.msra.mxu0 0.0
        %1354 = vmatprep.subr.mxu0 0.0
        %1355 = vmatpush2.msra.mxu0 0.0
        %1356 = vmatprep.subr.mxu0 0.0
        %1357 = vmatpush2.msra.mxu0 0.0
        %1358 = vmatprep.subr.mxu0 0.0
        %1359 = vmatpush2.msra.mxu0 0.0
        %1360 = vmatprep.subr.mxu0 0.0
        %1361 = vmatpush2.msra.mxu0 0.0
        %1362 = vmatprep.subr.mxu0 0.0
        %1363 = vmatpush2.msra.mxu0 0.0
        %1364 = vmatprep.subr.mxu0 0.0
        %1365 = vmatpush2.msra.mxu0 0.0
        %1366 = vmatprep.subr.mxu0 0.0
        %1367 = vmatpush2.msra.mxu0 0.0
        %1368 = vmatprep.subr.mxu0 0.0
        %1369 = vmatpush2.msra.mxu0 0.0
        %1370 = vmatprep.subr.mxu0 0.0
        %1371 = vmatpush2.msra.mxu0 0.0
        %1372 = vmatprep.subr.mxu0 0.0
        %1373 = vmatpush2.msra.mxu0 0.0
        %1374 = vmatprep.subr.mxu0 0.0
        %1375 = vmatpush2.msra.mxu0 0.0
        %1376 = vmatprep.subr.mxu0 0.0
        %1377 = vmatpush2.msra.mxu0 0.0
        %1378 = vmatprep.subr.mxu0 0.0
        %1379 = vmatpush2.msra.mxu0 0.0
        %1380 = vmatprep.subr.mxu0 0.0
        %1381 = vmatpush2.msra.mxu0 0.0
        %1382 = vmatprep.mubr.f32.mxu0 0.0
        %1383 = vmatmul.mubr.f32.gmra.mxu0 %v1316
        %v1384 = vpop.f32.mrf.mxu0
        %v1385 = vadd.f32 0.0, %v1384
        %v1386 = vpop.f32.mrf.mxu0
        %1387 = vdwg.mxu0
        %v1388 = vadd.f32 %v1146, %v1385
        %v1389 = vld [vmem:[%s5] sm:$0x1]
        %v1390 = vlaneseq
        %v1391 = vshrl.u32 %v1390, 7
        %v1392 = vsub.s32 0, %v1391
        %v1393 = vrot.slane %v1389, %v1392
        %v1394 = vadd.f32 %v1388, %v1393
        %v1395 = vadd.f32 %v1394, %v330
        %v1396 = vsel %vm342, %v1395, 0.0
        %1397 = vadd.xlane.f32.xlu0 %v1396
        %v1398 = vpop.xlane.xlu0 %1397
        %v1399 = vrcp.pop 32.0
        %v1400 = vmul.f32 %v1398, %v1399
        %v1401 = vsub.f32 %v1395, %v1400
        %v1402 = vmul.f32 %v1401, %v1401
        %v1403 = vsel %vm342, %v1402, 0.0
        %1404 = vadd.xlane.f32.xlu0 %v1403
        %v1405 = vpop.xlane.xlu0 %1404
        %v1406 = vmul.f32 %v1405, %v1399
        %v1407 = vadd.f32 %v1406, 1e-12
        %v1408 = vrsqrt.pop %v1407
        %v1409 = vmul.f32 %v1401, %v1408
        %v1410 = vld [vmem:[%s5 + $0x1] sm:$0x1]
        %v1411 = vlaneseq
        %v1412 = vshrl.u32 %v1411, 7
        %v1413 = vsub.s32 0, %v1412
        %v1414 = vrot.slane %v1410, %v1413
        %v1415 = vmul.f32 %v1414, %v1409
        %v1416 = vld [vmem:[%s5 + $0x2] sm:$0x1]
        %v1417 = vlaneseq
        %v1418 = vshrl.u32 %v1417, 7
        %v1419 = vsub.s32 0, %v1418
        %v1420 = vrot.slane %v1416, %v1419
        %v1421 = vadd.f32 %v1415, %v1420
        %1422 = vst.msk [vmem:[%s329] sm:$0xff] %vm342, %v1421
        %s1423 = sand.u32 %s171, 1
        %s1424 = scalar_lea.sflag [#allocation4], %s1423
        %s1425 = sand.u32 %s171, 1
        %s1426 = smul.addr %s1425, 8
        %s1427 = scalar_lea.vmem [#allocation10], %s1426
        // Predicated region
        $region61: #{tpu_custom_call.1} parent=43 // pred_check
          %p1428 = pneg %p181
        $region62: #{tpu_custom_call.1} parent=43 // pred_check_branch
          %1430 = sbr.rel (%p1428) target = $region64
        $region63: #{tpu_custom_call.1} parent=43 // pred_region
          %s1432 = ssub.s32 128, 128
          %1433 = vsyncadd %s1424, %s1432
          %s1434 = smul.addr %s27, 128
          %s1435 = scalar_lea.hbm %s6, %s1434
          %s1437 = sshll.u32 %s1427, 4
          %s1438 = int_to_ptr.vmem [resolvable:$true] %s1437
          %1440 = dma.vmem_to_hbm [thread:$0]  %s1438, 128, %s1435, %s1424
        $region64: #{tpu_custom_call.1} parent=43 // pred_fallthru
          _
      $region44: #{tpu_custom_call.1} parent=5 // pred_fallthru
        _
      %p1441 = scmp.le.s32.totalorder 2, %s22
      // Predicated region
      $region65: #{tpu_custom_call.1} parent=5 // pred_check
        %p1442 = pneg %p1441
      $region66: #{tpu_custom_call.1} parent=5 // pred_check_branch
        %1444 = sbr.rel (%p1442) target = $region68
      $region67: #{tpu_custom_call.1} parent=5 // pred_region
        %s1445 = ssub.s32 %s22, 2
        // Predicated region
        $region69: #{tpu_custom_call.1} parent=67 // pred_check
          %p1446 = pneg %p187
        $region70: #{tpu_custom_call.1} parent=67 // pred_check_branch
          %1448 = sbr.rel (%p1446) target = $region72
        $region71: #{tpu_custom_call.1} parent=67 // pred_region
          %s1449 = sand.u32 %s172, 1
          %s1450 = scalar_lea.sflag [#allocation4], %s1449
          %s1451 = sand.u32 %s172, 1
          %s1452 = smul.addr %s1451, 8
          %s1453 = scalar_lea.vmem [#allocation10], %s1452
          %1454 = dma.done %s1450, 128
        $region72: #{tpu_custom_call.1} parent=67 // pred_fallthru
          _
      $region68: #{tpu_custom_call.1} parent=5 // pred_fallthru
        _
    $region6: #{tpu_custom_call.1} parent=1 // loop_footer
      %s26 = sadd.s32 1, %s22
    $region7: #{tpu_custom_call.1} parent=1 // loop_footer_branch
      %21 = sbr.rel target = $region3
    $region8: #{tpu_custom_call.1} parent=1 // loop_exit
      _
    %1455 = vsyncpa [#allocation3], 1
    %s1456 = scalar_lea.sflag [#allocation3], 1
    %1457 = vsyncpa %s1456, 1
    %1458 = vsyncpa [#allocation6], 1
    %s1459 = scalar_lea.sflag [#allocation6], 1
    %1460 = vsyncpa %s1459, 1
    %1461 = vsyncpa [#allocation9], 1
    %1462 = vsyncpa [#allocation4], 1
    %s1463 = scalar_lea.sflag [#allocation4], 1
    %1464 = vsyncpa %s1463, 1

</llo_original>
